<compile_context>
chip_gen: v5e
topology: v5e:2x2
jax: 0.10.0
libtpu: 0.0.40
codegen_flags: <defaults>
</compile_context>

<pallas_src>
import jax
import jax.numpy as jnp
from jax.experimental import pallas as pl
from jax.experimental.pallas import tpu as pltpu

MAX_LOGSTD = 10.0  # torch_geometric.nn.models.autoencoder.MAX_LOGSTD
_HAS_BUFFERED = hasattr(pl, "Buffered")


def _round_up(x, m):
    return (x + m - 1) // m * m


# ----------------------------- Pallas kernel ------------------------------- #
def _make_encode_kernel(*, apply_w, has_eps, ch):
    """Fused GCN-encode kernel body.

    apply_w: True  -> streamed operand is X; apply fused W at the last k step.
             False -> streamed operand is already X @ W; only add bias.
    has_eps: training path (fused [mu|logstd], clamp, exp, reparameterize);
             False -> eval path, z = mu only.
    ch:      padded out_channels (128-aligned split point of the fused output).
    """

    def kernel(a_ref, b_ref, *rest):
        if apply_w:
            w_ref, bias_ref = rest[0], rest[1]
            rest = rest[2:]
        else:
            w_ref, bias_ref = None, rest[0]
            rest = rest[1:]
        if has_eps:
            eps_ref, z_ref, acc_ref = rest
        else:
            z_ref, acc_ref = rest
            eps_ref = None

        k = pl.program_id(1)

        @pl.when(k == 0)
        def _():
            acc_ref[...] = jnp.zeros_like(acc_ref)

        acc_ref[...] += jnp.dot(a_ref[...], b_ref[...],
                                preferred_element_type=jnp.float32)

        @pl.when(k == pl.num_programs(1) - 1)
        def _():
            if apply_w:
                h = jnp.dot(acc_ref[...].astype(w_ref.dtype), w_ref[...],
                            preferred_element_type=jnp.float32) + bias_ref[...]
            else:
                h = acc_ref[...] + bias_ref[...]
            if has_eps:
                mu = h[:, :ch]
                logstd = jnp.minimum(h[:, ch:], MAX_LOGSTD)   # .clamp(max=MAX_LOGSTD)
                z = mu + eps_ref[...] * jnp.exp(logstd)       # reparameterize
            else:
                z = h                                         # eval: z = mu
            z_ref[...] = z.astype(z_ref.dtype)

    return kernel


# --------------------- adjacency normalization (wrapper) ------------------- #
def gcn_norm_dense_padded(edge_index, num_nodes, padded_nodes, dtype=jnp.float32):
    """Dense D^{-1/2}(A + I)D^{-1/2}, built directly at the padded size.

    Matches PyG gcn_norm(add_self_loops=True): duplicate edges accumulate
    (scatter-add) and self loops are only added where missing. Padded rows/cols
    stay exactly zero (degree 0 -> dinv 0).
    """
    src = edge_index[0].astype(jnp.int32)
    dst = edge_index[1].astype(jnp.int32)
    a = jnp.zeros((padded_nodes, padded_nodes), jnp.float32)
    a = a.at[dst, src].add(1.0)                        # message src -> dst
    diag = jnp.arange(num_nodes)
    dvals = a[diag, diag]
    a = a.at[diag, diag].set(jnp.where(dvals > 0.0, dvals, 1.0))
    deg = a.sum(axis=1)
    dinv = jnp.where(deg > 0.0, jax.lax.rsqrt(deg), 0.0)
    return (dinv[:, None] * a * dinv[None, :]).astype(dtype)


# --------------------------- VMEM budget / tiling --------------------------- #
def _vmem_capacity_bytes():
    try:
        info = pltpu.get_tpu_info()
        cap = getattr(info, "vmem_capacity_bytes", None)
        if cap:
            return int(cap)
    except Exception:
        pass
    return 64 << 20  # conservative (v7x-sized) default


def _choose_tiles(np_, *, stream_width, ch, acc_width, cbytes, out_bytes,
                  has_eps, resident_bytes, budget):
    # contraction tile: largest of 512/256/128 dividing padded N
    tk = 128
    for cand in (512, 256):
        if cand <= np_ and np_ % cand == 0:
            tk = cand
            break
    # bytes that scale with tm (double-buffered A/eps/out tiles + f32 accumulator)
    per_row = (tk * cbytes * 2
               + ch * out_bytes * 2
               + (ch * 4 * 2 if has_eps else 0)
               + acc_width * 4)
    fixed = tk * stream_width * cbytes * 2 + resident_bytes
    cands = [c for c in (1024, 512, 256, 128) if c <= np_ and np_ % c == 0]
    if np_ >= 256:  # keep >= 2 row tiles so megacore has work on both cores
        multi = [c for c in cands if np_ // c >= 2]
        if multi:
            cands = multi
    fits = [c for c in cands if fixed + c * per_row <= budget] or [cands[-1]]
    even = [c for c in fits if (np_ // c) % 2 == 0]   # balanced core split
    tm = (even or fits)[0]
    return tm, tk


# ------------------------------- JAX wrapper -------------------------------- #
def vgae_link_predictor_forward(x, edge_index, w_mu, b_mu, w_ls, b_ls, eps=None, *,
                                compute_dtype=jnp.bfloat16, out_dtype=jnp.float32):
    """z = VGAE.encode(x, edge_index) with GCNConv mu/logstd encoders.

    x:          (N, F_in) node features
    edge_index: (2, E) int edges
    w_mu, w_ls: (F_in, C) GCNConv weights (pre-transposed vs PyTorch's (C, F_in))
    b_mu, b_ls: (C,)
    eps:        (N, C) reparameterization noise; None -> eval mode (z = mu)
    """
    n, f_in = x.shape
    c = w_mu.shape[1]
    has_eps = eps is not None

    np_ = _round_up(n, 128)      # padded node dim (rows + contraction)
    fp = _round_up(f_in, 128)    # padded feature dim
    ch = _round_up(c, 128)       # padded per-head output width
    out_w = 2 * ch if has_eps else ch

    cbytes = jnp.dtype(compute_dtype).itemsize
    obytes = jnp.dtype(out_dtype).itemsize

    # normalized adjacency, built straight at padded size, single cast
    a_p = gcn_norm_dense_padded(edge_index, n, np_, compute_dtype)

    # fused [W_mu | W_logstd] (training) or just W_mu (eval), zero padded
    w_cat = jnp.zeros((fp, out_w), jnp.float32)
    w_cat = w_cat.at[:f_in, :c].set(w_mu.astype(jnp.float32))
    b_cat = jnp.zeros((1, out_w), jnp.float32)
    b_cat = b_cat.at[0, :c].set(b_mu.astype(jnp.float32))
    if has_eps:
        w_cat = w_cat.at[:f_in, ch:ch + c].set(w_ls.astype(jnp.float32))
        b_cat = b_cat.at[0, ch:ch + c].set(b_ls.astype(jnp.float32))

    x_pad32 = jnp.zeros((np_, fp), jnp.float32).at[:n, :f_in].set(x.astype(jnp.float32))

    # Matmul-order choice: stream the narrower of X / (X @ W) through the MXU.
    xw_first = out_w <= fp
    if xw_first:
        # small O(N*F*2C) matmul in the wrapper; the kernel only streams A @ (XW)
        b_mat = jnp.dot(x_pad32, w_cat,
                        precision=jax.lax.Precision.HIGHEST).astype(compute_dtype)
        stream_w, acc_w = out_w, out_w
        resident = 2 * out_w * 4                       # bias only
    else:
        b_mat = x_pad32.astype(compute_dtype)
        stream_w, acc_w = fp, fp
        resident = fp * out_w * cbytes + 2 * out_w * 4  # fused W + bias

    cap = _vmem_capacity_bytes()
    budget = cap * 5 // 8                # tile budget, leave pipeline headroom
    vmem_limit = cap * 7 // 8
    tm, tk = _choose_tiles(np_, stream_width=stream_w, ch=ch, acc_width=acc_w,
                           cbytes=cbytes, out_bytes=obytes, has_eps=has_eps,
                           resident_bytes=resident, budget=budget)

    if has_eps:
        eps_p = jnp.zeros((np_, ch), jnp.float32).at[:n, :c].set(eps.astype(jnp.float32))

    kernel = _make_encode_kernel(apply_w=not xw_first, has_eps=has_eps, ch=ch)
    grid = (np_ // tm, np_ // tk)

    def _run(single_buffer_consts):
        def const_spec(shape):
            kwargs = {}
            if single_buffer_consts and _HAS_BUFFERED:
                kwargs["pipeline_mode"] = pl.Buffered(1)   # constant operand
            return pl.BlockSpec(shape, lambda i, k: (0, 0), **kwargs)

        in_specs = [pl.BlockSpec((tm, tk), lambda i, k: (i, k)),        # A_hat tile
                    pl.BlockSpec((tk, stream_w), lambda i, k: (k, 0))]  # X or XW tile
        operands = [a_p, b_mat]
        if not xw_first:
            in_specs.append(const_spec((fp, out_w)))                    # fused W
            operands.append(w_cat.astype(compute_dtype))
        in_specs.append(const_spec((1, out_w)))                         # fused bias
        operands.append(b_cat)
        if has_eps:
            in_specs.append(pl.BlockSpec((tm, ch), lambda i, k: (i, 0)))  # eps tile
            operands.append(eps_p)

        out = pl.pallas_call(
            kernel,
            out_shape=jax.ShapeDtypeStruct((np_, ch), out_dtype),
            grid_spec=pltpu.PrefetchScalarGridSpec(
                num_scalar_prefetch=0,
                grid=grid,
                in_specs=in_specs,
                out_specs=pl.BlockSpec((tm, ch), lambda i, k: (i, 0)),
                scratch_shapes=[pltpu.VMEM((tm, acc_w), jnp.float32)],
            ),
            compiler_params=pltpu.CompilerParams(
                dimension_semantics=("parallel", "arbitrary"),
                vmem_limit_bytes=int(vmem_limit),
            ),
        )(*operands)
        return jax.block_until_ready(out)

    try:
        z_pad = _run(True)
    except Exception:
        # pipeline_mode / Buffered(1) unsupported on this build -> default buffering
        z_pad = _run(False)

    return z_pad[:n, :c]


# --------------------------------- Reference -------------------------------- #
def vgae_forward_ref(x, a_hat, w_mu, b_mu, w_ls, b_ls, eps):
    hp = jax.lax.Precision.HIGHEST
    ax = jnp.dot(a_hat, x, precision=hp)
    mu = jnp.dot(ax, w_mu, precision=hp) + b_mu
    if eps is None:
        return mu
    logstd = jnp.minimum(jnp.dot(ax, w_ls, precision=hp) + b_ls, MAX_LOGSTD)
    return mu + eps * jnp.exp(logstd)


# ----------------------------------- Demo ------------------------------------ #
if __name__ == "__main__":
    in_channels, out_channels, use_both = 16, 64, True
    f_in = in_channels * (2 if use_both else 1)     # 32
    num_nodes = 12

    key = jax.random.PRNGKey(0)
    kx, kwm, kbm, kwl, kbl, ke = jax.random.split(key, 6)

    x = jax.random.normal(kx, (num_nodes, f_in), dtype=jnp.float32)
    w_mu = jax.random.normal(kwm, (f_in, out_channels), dtype=jnp.float32) * 0.1
    b_mu = jax.random.normal(kbm, (out_channels,), dtype=jnp.float32) * 0.1
    w_ls = jax.random.normal(kwl, (f_in, out_channels), dtype=jnp.float32) * 0.1
    b_ls = jax.random.normal(kbl, (out_channels,), dtype=jnp.float32) * 0.1
    eps = jax.random.normal(ke, (num_nodes, out_channels), dtype=jnp.float32)

    # deterministic bidirectional ring graph
    ring = jnp.arange(num_nodes)
    src = jnp.concatenate([ring, (ring + 1) % num_nodes])
    dst = jnp.concatenate([(ring + 1) % num_nodes, ring])
    edge_index = jnp.stack([src, dst]).astype(jnp.int32)

    a_hat = gcn_norm_dense_padded(edge_index, num_nodes, num_nodes)
    ref_train = vgae_forward_ref(x, a_hat, w_mu, b_mu, w_ls, b_ls, eps)
    ref_eval = vgae_forward_ref(x, a_hat, w_mu, b_mu, w_ls, b_ls, None)

    # training path, f32 (tight check of fused [mu|logstd] + reparameterization)
    z32 = vgae_link_predictor_forward(x, edge_index, w_mu, b_mu, w_ls, b_ls, eps,
                                      compute_dtype=jnp.float32)
    z32 = jax.block_until_ready(z32)
    assert z32.shape == (num_nodes, out_channels)
    assert jnp.allclose(z32, ref_train, atol=2e-3, rtol=2e-3)

    # eval path (eps=None): logstd half + eps stream dropped, XW-first order
    z_eval = jax.block_until_ready(
        vgae_link_predictor_forward(x, edge_index, w_mu, b_mu, w_ls, b_ls, None,
                                    compute_dtype=jnp.float32))
    assert jnp.allclose(z_eval, ref_eval, atol=2e-3, rtol=2e-3)

    # bf16-input / f32-accumulate perf configuration
    zbf = jax.block_until_ready(
        vgae_link_predictor_forward(x, edge_index, w_mu, b_mu, w_ls, b_ls, eps,
                                    compute_dtype=jnp.bfloat16))
    assert jnp.allclose(zbf, ref_train, atol=1e-1, rtol=1e-1)

    # slightly larger graph: exercises the multi-tile (rows x contraction) grid
    n2, f2, c2 = 300, 48, 32
    k2 = jax.random.split(jax.random.PRNGKey(1), 7)
    x2 = jax.random.normal(k2[0], (n2, f2), dtype=jnp.float32)
    w_mu2 = jax.random.normal(k2[1], (f2, c2), dtype=jnp.float32) * 0.1
    b_mu2 = jax.random.normal(k2[2], (c2,), dtype=jnp.float32) * 0.1
    w_ls2 = jax.random.normal(k2[3], (f2, c2), dtype=jnp.float32) * 0.1
    b_ls2 = jax.random.normal(k2[4], (c2,), dtype=jnp.float32) * 0.1
    eps2 = jax.random.normal(k2[5], (n2, c2), dtype=jnp.float32)
    e2 = jax.random.randint(k2[6], (2, 4 * n2), 0, n2, dtype=jnp.int32)

    a_hat2 = gcn_norm_dense_padded(e2, n2, n2)
    ref2_train = vgae_forward_ref(x2, a_hat2, w_mu2, b_mu2, w_ls2, b_ls2, eps2)
    ref2_eval = vgae_forward_ref(x2, a_hat2, w_mu2, b_mu2, w_ls2, b_ls2, None)

    z2 = jax.block_until_ready(
        vgae_link_predictor_forward(x2, e2, w_mu2, b_mu2, w_ls2, b_ls2, eps2,
                                    compute_dtype=jnp.float32))
    assert jnp.allclose(z2, ref2_train, atol=2e-3, rtol=2e-3)

    z2e = jax.block_until_ready(
        vgae_link_predictor_forward(x2, e2, w_mu2, b_mu2, w_ls2, b_ls2, None,
                                    compute_dtype=jnp.float32))
    assert jnp.allclose(z2e, ref2_eval, atol=2e-3, rtol=2e-3)

    print("KERNEL_OK")
</pallas_src>

<mosaic_0001>
module attributes {stable_mosaic.version = 11 : i64} {
  func.func @kernel(%arg0: i32, %arg1: i32, %arg2: memref<128x128xf32, #tpu.memory_space<vmem>>, %arg3: memref<128x128xf32, #tpu.memory_space<vmem>>, %arg4: memref<128x256xf32, #tpu.memory_space<vmem>>, %arg5: memref<1x256xf32, #tpu.memory_space<vmem>>, %arg6: memref<128x128xf32, #tpu.memory_space<vmem>>, %arg7: memref<128x128xf32, #tpu.memory_space<vmem>>, %arg8: memref<128x128xf32, #tpu.memory_space<vmem>>) attributes {dimension_semantics = [#tpu.dimension_semantics<parallel>, #tpu.dimension_semantics<arbitrary>], iteration_bounds = array<i64: 1, 1>, scalar_prefetch = 0 : i64, scratch_operands = 1 : i64, tpu.core_type = #tpu.core_type<tc>, window_params = [{transform_indices = @transform_0, window_bounds = array<i64: 128, 128>}, {transform_indices = @transform_1, window_bounds = array<i64: 128, 128>}, {pipeline_mode = #tpu.pipeline_mode<synchronous>, transform_indices = @transform_2, window_bounds = array<i64: 128, 256>}, {pipeline_mode = #tpu.pipeline_mode<synchronous>, transform_indices = @transform_3, window_bounds = array<i64: 1, 256>}, {transform_indices = @transform_4, window_bounds = array<i64: 128, 128>}, {transform_indices = @transform_5, window_bounds = array<i64: 128, 128>}]} {
    %c0_i32 = arith.constant 0 : i32
    %0 = arith.cmpi eq, %arg1, %c0_i32 : i32
    %1 = arith.extui %0 : i1 to i32
    %c0_i32_0 = arith.constant 0 : i32
    %2 = arith.cmpi ne, %1, %c0_i32_0 : i32
    scf.if %2 {
      %cst_10 = arith.constant 0.000000e+00 : f32
      %12 = vector.broadcast %cst_10 : f32 to vector<128x128xf32>
      %c0_11 = arith.constant 0 : index
      %c0_12 = arith.constant 0 : index
      %13 = vector.load %arg8[%c0_11, %c0_12] : memref<128x128xf32, #tpu.memory_space<vmem>>, vector<128x128xf32>
      tpu.vector_store %arg8[%c0_11, %c0_12], %12 {strides = array<i32>} : memref<128x128xf32, #tpu.memory_space<vmem>>, vector<128x128xf32>,
    } else {
    }
    %c0 = arith.constant 0 : index
    %c0_1 = arith.constant 0 : index
    %3 = vector.load %arg8[%c0, %c0_1] : memref<128x128xf32, #tpu.memory_space<vmem>>, vector<128x128xf32>
    %c0_2 = arith.constant 0 : index
    %c0_3 = arith.constant 0 : index
    %4 = vector.load %arg2[%c0_2, %c0_3] : memref<128x128xf32, #tpu.memory_space<vmem>>, vector<128x128xf32>
    %c0_4 = arith.constant 0 : index
    %c0_5 = arith.constant 0 : index
    %5 = vector.load %arg3[%c0_4, %c0_5] : memref<128x128xf32, #tpu.memory_space<vmem>>, vector<128x128xf32>
    %cst = arith.constant dense<0.000000e+00> : vector<128x128xf32>
    %6 = tpu.matmul %4, %5, %cst {dimension_numbers = #tpu.dot_dimension_numbers<[1], [0], [0], [1], [0, 0, 1, 1], [], []>} : vector<128x128xf32>, vector<128x128xf32>, vector<128x128xf32> -> vector<128x128xf32>
    %7 = arith.addf %3, %6 : vector<128x128xf32>
    %c0_6 = arith.constant 0 : index
    %c0_7 = arith.constant 0 : index
    %8 = vector.load %arg8[%c0_6, %c0_7] : memref<128x128xf32, #tpu.memory_space<vmem>>, vector<128x128xf32>
    tpu.vector_store %arg8[%c0_6, %c0_7], %7 {strides = array<i32>} : memref<128x128xf32, #tpu.memory_space<vmem>>, vector<128x128xf32>,
    %c0_i32_8 = arith.constant 0 : i32
    %9 = arith.cmpi eq, %arg1, %c0_i32_8 : i32
    %10 = arith.extui %9 : i1 to i32
    %c0_i32_9 = arith.constant 0 : i32
    %11 = arith.cmpi ne, %10, %c0_i32_9 : i32
    scf.if %11 {
      %c0_10 = arith.constant 0 : index
      %c0_11 = arith.constant 0 : index
      %12 = vector.load %arg8[%c0_10, %c0_11] : memref<128x128xf32, #tpu.memory_space<vmem>>, vector<128x128xf32>
      %c0_12 = arith.constant 0 : index
      %c0_13 = arith.constant 0 : index
      %13 = vector.load %arg4[%c0_12, %c0_13] : memref<128x256xf32, #tpu.memory_space<vmem>>, vector<128x256xf32>
      %cst_14 = arith.constant dense<0.000000e+00> : vector<128x256xf32>
      %14 = tpu.matmul %12, %13, %cst_14 {dimension_numbers = #tpu.dot_dimension_numbers<[1], [0], [0], [1], [0, 0, 1, 1], [], []>} : vector<128x128xf32>, vector<128x256xf32>, vector<128x256xf32> -> vector<128x256xf32>
      %c0_15 = arith.constant 0 : index
      %c0_16 = arith.constant 0 : index
      %15 = vector.load %arg5[%c0_15, %c0_16] : memref<1x256xf32, #tpu.memory_space<vmem>>, vector<1x256xf32>
      %16 = vector.broadcast %15 : vector<1x256xf32> to vector<128x256xf32>
      %17 = arith.addf %14, %16 : vector<128x256xf32>
      %18 = vector.extract_strided_slice %17 {offsets = [0, 0], sizes = [128, 128], strides = [1, 1]} : vector<128x256xf32> to vector<128x128xf32>
      %19 = vector.extract_strided_slice %17 {offsets = [0, 128], sizes = [128, 128], strides = [1, 1]} : vector<128x256xf32> to vector<128x128xf32>
      %cst_17 = arith.constant 1.000000e+01 : f32
      %20 = vector.broadcast %cst_17 : f32 to vector<128x128xf32>
      %21 = arith.minimumf %19, %20 : vector<128x128xf32>
      %c0_18 = arith.constant 0 : index
      %c0_19 = arith.constant 0 : index
      %22 = vector.load %arg6[%c0_18, %c0_19] : memref<128x128xf32, #tpu.memory_space<vmem>>, vector<128x128xf32>
      %23 = math.exp %21 : vector<128x128xf32>
      %24 = arith.mulf %22, %23 : vector<128x128xf32>
      %25 = arith.addf %18, %24 : vector<128x128xf32>
      %c0_20 = arith.constant 0 : index
      %c0_21 = arith.constant 0 : index
      %26 = vector.load %arg7[%c0_20, %c0_21] : memref<128x128xf32, #tpu.memory_space<vmem>>, vector<128x128xf32>
      tpu.vector_store %arg7[%c0_20, %c0_21], %25 {strides = array<i32>} : memref<128x128xf32, #tpu.memory_space<vmem>>, vector<128x128xf32>,
    } else {
    }
    return
  }
  func.func @transform_0(%arg0: i32, %arg1: i32) -> (i32, i32) {
    %c0_i32 = arith.constant 0 : i32
    return %arg0, %arg1 : i32, i32
  }
  func.func @transform_1(%arg0: i32, %arg1: i32) -> (i32, i32) {
    %c0_i32 = arith.constant 0 : i32
    %c0_i32_0 = arith.constant 0 : i32
    return %arg1, %c0_i32 : i32, i32
  }
  func.func @transform_2(%arg0: i32, %arg1: i32) -> (i32, i32) {
    %c0_i32 = arith.constant 0 : i32
    %c0_i32_0 = arith.constant 0 : i32
    %c0_i32_1 = arith.constant 0 : i32
    return %c0_i32, %c0_i32_0 : i32, i32
  }
  func.func @transform_3(%arg0: i32, %arg1: i32) -> (i32, i32) {
    %c0_i32 = arith.constant 0 : i32
    %c0_i32_0 = arith.constant 0 : i32
    %c0_i32_1 = arith.constant 0 : i32
    return %c0_i32, %c0_i32_0 : i32, i32
  }
  func.func @transform_4(%arg0: i32, %arg1: i32) -> (i32, i32) {
    %c0_i32 = arith.constant 0 : i32
    %c0_i32_0 = arith.constant 0 : i32
    return %arg0, %c0_i32 : i32, i32
  }
  func.func @transform_5(%arg0: i32, %arg1: i32) -> (i32, i32) {
    %c0_i32 = arith.constant 0 : i32
    %c0_i32_0 = arith.constant 0 : i32
    return %arg0, %c0_i32 : i32, i32
  }
}

module attributes {stable_mosaic.version = 11 : i64} {
  func.func @kernel(%arg0: i32, %arg1: i32, %arg2: memref<128x128xf32, #tpu.memory_space<vmem>>, %arg3: memref<128x128xf32, #tpu.memory_space<vmem>>, %arg4: memref<128x256xf32, #tpu.memory_space<vmem>>, %arg5: memref<1x256xf32, #tpu.memory_space<vmem>>, %arg6: memref<128x128xf32, #tpu.memory_space<vmem>>, %arg7: memref<128x128xf32, #tpu.memory_space<vmem>>, %arg8: memref<128x128xf32, #tpu.memory_space<vmem>>) attributes {dimension_semantics = [#tpu.dimension_semantics<parallel>, #tpu.dimension_semantics<arbitrary>], iteration_bounds = array<i64: 1, 1>, scalar_prefetch = 0 : i64, scratch_operands = 1 : i64, tpu.core_type = #tpu.core_type<tc>, window_params = [{transform_indices = @transform_0, window_bounds = array<i64: 128, 128>}, {transform_indices = @transform_1, window_bounds = array<i64: 128, 128>}, {pipeline_mode = #tpu.pipeline_mode<synchronous>, transform_indices = @transform_2, window_bounds = array<i64: 128, 256>}, {pipeline_mode = #tpu.pipeline_mode<synchronous>, transform_indices = @transform_3, window_bounds = array<i64: 1, 256>}, {transform_indices = @transform_4, window_bounds = array<i64: 128, 128>}, {transform_indices = @transform_5, window_bounds = array<i64: 128, 128>}]} {
    %c0_i32 = arith.constant 0 : i32
    %0 = arith.cmpi eq, %arg1, %c0_i32 : i32
    %1 = arith.extui %0 : i1 to i32
    %c0_i32_0 = arith.constant 0 : i32
    %2 = arith.cmpi ne, %1, %c0_i32_0 : i32
    scf.if %2 {
      %cst_10 = arith.constant 0.000000e+00 : f32
      %12 = vector.broadcast %cst_10 : f32 to vector<128x128xf32>
      %c0_11 = arith.constant 0 : index
      %c0_12 = arith.constant 0 : index
      %13 = vector.load %arg8[%c0_11, %c0_12] : memref<128x128xf32, #tpu.memory_space<vmem>>, vector<128x128xf32>
      tpu.vector_store %arg8[%c0_11, %c0_12], %12 {strides = array<i32>} : memref<128x128xf32, #tpu.memory_space<vmem>>, vector<128x128xf32>,
    } else {
    }
    %c0 = arith.constant 0 : index
    %c0_1 = arith.constant 0 : index
    %3 = vector.load %arg8[%c0, %c0_1] : memref<128x128xf32, #tpu.memory_space<vmem>>, vector<128x128xf32>
    %c0_2 = arith.constant 0 : index
    %c0_3 = arith.constant 0 : index
    %4 = vector.load %arg2[%c0_2, %c0_3] : memref<128x128xf32, #tpu.memory_space<vmem>>, vector<128x128xf32>
    %c0_4 = arith.constant 0 : index
    %c0_5 = arith.constant 0 : index
    %5 = vector.load %arg3[%c0_4, %c0_5] : memref<128x128xf32, #tpu.memory_space<vmem>>, vector<128x128xf32>
    %cst = arith.constant dense<0.000000e+00> : vector<128x128xf32>
    %6 = tpu.matmul %4, %5, %cst {dimension_numbers = #tpu.dot_dimension_numbers<[1], [0], [0], [1], [0, 0, 1, 1], [], []>} : vector<128x128xf32>, vector<128x128xf32>, vector<128x128xf32> -> vector<128x128xf32>
    %7 = arith.addf %3, %6 : vector<128x128xf32>
    %c0_6 = arith.constant 0 : index
    %c0_7 = arith.constant 0 : index
    %8 = vector.load %arg8[%c0_6, %c0_7] : memref<128x128xf32, #tpu.memory_space<vmem>>, vector<128x128xf32>
    tpu.vector_store %arg8[%c0_6, %c0_7], %7 {strides = array<i32>} : memref<128x128xf32, #tpu.memory_space<vmem>>, vector<128x128xf32>,
    %c0_i32_8 = arith.constant 0 : i32
    %9 = arith.cmpi eq, %arg1, %c0_i32_8 : i32
    %10 = arith.extui %9 : i1 to i32
    %c0_i32_9 = arith.constant 0 : i32
    %11 = arith.cmpi ne, %10, %c0_i32_9 : i32
    scf.if %11 {
      %c0_10 = arith.constant 0 : index
      %c0_11 = arith.constant 0 : index
      %12 = vector.load %arg8[%c0_10, %c0_11] : memref<128x128xf32, #tpu.memory_space<vmem>>, vector<128x128xf32>
      %c0_12 = arith.constant 0 : index
      %c0_13 = arith.constant 0 : index
      %13 = vector.load %arg4[%c0_12, %c0_13] : memref<128x256xf32, #tpu.memory_space<vmem>>, vector<128x256xf32>
      %cst_14 = arith.constant dense<0.000000e+00> : vector<128x256xf32>
      %14 = tpu.matmul %12, %13, %cst_14 {dimension_numbers = #tpu.dot_dimension_numbers<[1], [0], [0], [1], [0, 0, 1, 1], [], []>} : vector<128x128xf32>, vector<128x256xf32>, vector<128x256xf32> -> vector<128x256xf32>
      %c0_15 = arith.constant 0 : index
      %c0_16 = arith.constant 0 : index
      %15 = vector.load %arg5[%c0_15, %c0_16] : memref<1x256xf32, #tpu.memory_space<vmem>>, vector<1x256xf32>
      %16 = vector.broadcast %15 : vector<1x256xf32> to vector<128x256xf32>
      %17 = arith.addf %14, %16 : vector<128x256xf32>
      %18 = vector.extract_strided_slice %17 {offsets = [0, 0], sizes = [128, 128], strides = [1, 1]} : vector<128x256xf32> to vector<128x128xf32>
      %19 = vector.extract_strided_slice %17 {offsets = [0, 128], sizes = [128, 128], strides = [1, 1]} : vector<128x256xf32> to vector<128x128xf32>
      %cst_17 = arith.constant 1.000000e+01 : f32
      %20 = vector.broadcast %cst_17 : f32 to vector<128x128xf32>
      %21 = arith.minimumf %19, %20 : vector<128x128xf32>
      %c0_18 = arith.constant 0 : index
      %c0_19 = arith.constant 0 : index
      %22 = vector.load %arg6[%c0_18, %c0_19] : memref<128x128xf32, #tpu.memory_space<vmem>>, vector<128x128xf32>
      %23 = math.exp %21 : vector<128x128xf32>
      %24 = arith.mulf %22, %23 : vector<128x128xf32>
      %25 = arith.addf %18, %24 : vector<128x128xf32>
      %c0_20 = arith.constant 0 : index
      %c0_21 = arith.constant 0 : index
      %26 = vector.load %arg7[%c0_20, %c0_21] : memref<128x128xf32, #tpu.memory_space<vmem>>, vector<128x128xf32>
      tpu.vector_store %arg7[%c0_20, %c0_21], %25 {strides = array<i32>} : memref<128x128xf32, #tpu.memory_space<vmem>>, vector<128x128xf32>,
    } else {
    }
    return
  }
  func.func @transform_0(%arg0: i32, %arg1: i32) -> (i32, i32) {
    %c0_i32 = arith.constant 0 : i32
    return %arg0, %arg1 : i32, i32
  }
  func.func @transform_1(%arg0: i32, %arg1: i32) -> (i32, i32) {
    %c0_i32 = arith.constant 0 : i32
    %c0_i32_0 = arith.constant 0 : i32
    return %arg1, %c0_i32 : i32, i32
  }
  func.func @transform_2(%arg0: i32, %arg1: i32) -> (i32, i32) {
    %c0_i32 = arith.constant 0 : i32
    %c0_i32_0 = arith.constant 0 : i32
    %c0_i32_1 = arith.constant 0 : i32
    return %c0_i32, %c0_i32_0 : i32, i32
  }
  func.func @transform_3(%arg0: i32, %arg1: i32) -> (i32, i32) {
    %c0_i32 = arith.constant 0 : i32
    %c0_i32_0 = arith.constant 0 : i32
    %c0_i32_1 = arith.constant 0 : i32
    return %c0_i32, %c0_i32_0 : i32, i32
  }
  func.func @transform_4(%arg0: i32, %arg1: i32) -> (i32, i32) {
    %c0_i32 = arith.constant 0 : i32
    %c0_i32_0 = arith.constant 0 : i32
    return %arg0, %c0_i32 : i32, i32
  }
  func.func @transform_5(%arg0: i32, %arg1: i32) -> (i32, i32) {
    %c0_i32 = arith.constant 0 : i32
    %c0_i32_0 = arith.constant 0 : i32
    return %arg0, %c0_i32 : i32, i32
  }
}

</mosaic_0001>

<llo_original>
// kernel: tpu_custom_call.1
$region0: #{tpu_custom_call.1}
  #allocation0 [shape = 'u32[]', space=smem, size = 0x4, offset = 0x4, fixed_abs, tag = 'smem constant byte address 0x4 - core index']
  #allocation1 [shape = 'u32[72,128]{1,0:T(1,128)}', space=vmem, size = 0x9000, scoped, tag = 'internal scratch']
  #allocation2 [shape = 'f32[128,128]{1,0:T(8,128)}', space=vmem, size = 0x10000, scoped, tag = 'scratch operand']
  %s0 = inlined_call_operand.hbm [shape: f32[128,128], index: 0, kind: input, shape index: {}]
  %s1 = inlined_call_operand.hbm [shape: f32[128,128], index: 1, kind: input, shape index: {}]
  %s2 = inlined_call_operand.hbm [shape: f32[128,256], index: 2, kind: input, shape index: {}]
  %s3 = inlined_call_operand.vmem [shape: f32[1,256], index: 3, kind: input, shape index: {}]
  %s4 = inlined_call_operand.hbm [shape: f32[128,128], index: 4, kind: input, shape index: {}]
  %s5 = inlined_call_operand.hbm [shape: f32[128,128], index: 5, kind: output, shape index: {}]
  %s6 = sld [smem:[#allocation0]]
  $region54: #{tpu_custom_call.1} parent=0
    _
  %s8 = ssub.s32 1, %s6
  %s9 = scalar_select 0, %s8, %s6
  $region1: #{tpu_custom_call.1} parent=0
    #allocation3 [shape = 'u8[65536]{0}', space=vmem, size = 0x10000, scoped, tag = 'input window, operand 0, single buffered']
    #allocation4 [shape = 's32[1]{0}', space=sflag, size = 0x4, scoped, tag = 'scoped memory for tpu_custom_call.1']
    #allocation5 [shape = 's32[1]{0}', space=sflag, size = 0x4, scoped, tag = 'scoped memory for tpu_custom_call.1']
    #allocation6 [shape = 'u8[65536]{0}', space=vmem, size = 0x10000, scoped, tag = 'input window, operand 1, single buffered']
    #allocation7 [shape = 's32[1]{0}', space=sflag, size = 0x4, scoped, tag = 'scoped memory for tpu_custom_call.1']
    #allocation8 [shape = 'u8[131072]{0}', space=vmem, size = 0x20000, scoped, tag = 'input window, operand 2, single buffered']
    #allocation9 [shape = 'u8[65536]{0}', space=vmem, size = 0x10000, scoped, tag = 'input window, operand 4, single buffered']
    #allocation10 [shape = 's32[1]{0}', space=sflag, size = 0x4, scoped, tag = 'scoped memory for tpu_custom_call.1']
    #allocation11 [shape = 'u8[65536]{0}', space=vmem, size = 0x10000, scoped, tag = 'output window, operand 0, single buffered']
    %10 = vsyncpa [#allocation4], 0
    %11 = vsyncpa [#allocation7], 0
    %12 = vsyncpa [#allocation10], 0
    %13 = vsyncpa [#allocation5], 0
    // Predicated region
    $region2: #{tpu_custom_call.1} parent=1 // pred_check
      _
    $region3: #{tpu_custom_call.1} parent=1 // pred_check_branch
      %15 = sbr.rel (0) target = $region5
    $region4: #{tpu_custom_call.1} parent=1 // pred_region
      %17 = vsyncadd [#allocation4], 0
      %s18 = sshll.u32 %s0, 4
      %s19 = int_to_ptr.hbm [resolvable:$true] %s18
      %s20 = sshll.u32 [#allocation3], 4
      %s21 = int_to_ptr.vmem [resolvable:$true] %s20
      %26 = dma.hbm_to_vmem [thread:$0]  %s19, 2048, %s21, [#allocation4], 128, 128, 8
    $region5: #{tpu_custom_call.1} parent=1 // pred_fallthru
      _
    // Predicated region
    $region6: #{tpu_custom_call.1} parent=1 // pred_check
      _
    $region7: #{tpu_custom_call.1} parent=1 // pred_check_branch
      %28 = sbr.rel (0) target = $region9
    $region8: #{tpu_custom_call.1} parent=1 // pred_region
      %30 = vsyncadd [#allocation7], 0
      %s31 = sshll.u32 %s1, 4
      %s32 = int_to_ptr.hbm [resolvable:$true] %s31
      %s33 = sshll.u32 [#allocation6], 4
      %s34 = int_to_ptr.vmem [resolvable:$true] %s33
      %39 = dma.hbm_to_vmem [thread:$0]  %s32, 2048, %s34, [#allocation7], 128, 128, 8
    $region9: #{tpu_custom_call.1} parent=1 // pred_fallthru
      _
    // Predicated region
    $region10: #{tpu_custom_call.1} parent=1 // pred_check
      _
    $region11: #{tpu_custom_call.1} parent=1 // pred_check_branch
      %41 = sbr.rel (0) target = $region13
    $region12: #{tpu_custom_call.1} parent=1 // pred_region
      %43 = vsyncadd [#allocation7], 0
      %s44 = sshll.u32 %s2, 4
      %s45 = int_to_ptr.hbm [resolvable:$true] %s44
      %s46 = sshll.u32 [#allocation8], 4
      %s47 = int_to_ptr.vmem [resolvable:$true] %s46
      %52 = dma.hbm_to_vmem [thread:$0]  %s45, 4096, %s47, [#allocation7], 256, 256, 16
    $region13: #{tpu_custom_call.1} parent=1 // pred_fallthru
      _
    // Predicated region
    $region14: #{tpu_custom_call.1} parent=1 // pred_check
      _
    $region15: #{tpu_custom_call.1} parent=1 // pred_check_branch
      %54 = sbr.rel (0) target = $region17
    $region16: #{tpu_custom_call.1} parent=1 // pred_region
      _
    $region17: #{tpu_custom_call.1} parent=1 // pred_fallthru
      _
    // Predicated region
    $region18: #{tpu_custom_call.1} parent=1 // pred_check
      _
    $region19: #{tpu_custom_call.1} parent=1 // pred_check_branch
      %56 = sbr.rel (0) target = $region21
    $region20: #{tpu_custom_call.1} parent=1 // pred_region
      %58 = vsyncadd [#allocation10], 0
      %s59 = sshll.u32 %s4, 4
      %s60 = int_to_ptr.hbm [resolvable:$true] %s59
      %s61 = sshll.u32 [#allocation9], 4
      %s62 = int_to_ptr.vmem [resolvable:$true] %s61
      %67 = dma.hbm_to_vmem [thread:$0]  %s60, 2048, %s62, [#allocation10], 128, 128, 8
    $region21: #{tpu_custom_call.1} parent=1 // pred_fallthru
      _
    // Predicated region
    $region22: #{tpu_custom_call.1} parent=1 // pred_check
      _
    $region23: #{tpu_custom_call.1} parent=1 // pred_check_branch
      %69 = sbr.rel (0) target = $region25
    $region24: #{tpu_custom_call.1} parent=1 // pred_region
      %71 = dma.done [#allocation4], 2048
    $region25: #{tpu_custom_call.1} parent=1 // pred_fallthru
      _
    // Predicated region
    $region26: #{tpu_custom_call.1} parent=1 // pred_check
      _
    $region27: #{tpu_custom_call.1} parent=1 // pred_check_branch
      %73 = sbr.rel (0) target = $region29
    $region28: #{tpu_custom_call.1} parent=1 // pred_region
      %75 = dma.done [#allocation7], 2048
    $region29: #{tpu_custom_call.1} parent=1 // pred_fallthru
      _
    // Predicated region
    $region30: #{tpu_custom_call.1} parent=1 // pred_check
      _
    $region31: #{tpu_custom_call.1} parent=1 // pred_check_branch
      %77 = sbr.rel (0) target = $region33
    $region32: #{tpu_custom_call.1} parent=1 // pred_region
      %79 = dma.done [#allocation7], 4096
    $region33: #{tpu_custom_call.1} parent=1 // pred_fallthru
      _
    // Predicated region
    $region34: #{tpu_custom_call.1} parent=1 // pred_check
      _
    $region35: #{tpu_custom_call.1} parent=1 // pred_check_branch
      %81 = sbr.rel (0) target = $region37
    $region36: #{tpu_custom_call.1} parent=1 // pred_region
      %83 = dma.done [#allocation10], 2048
    $region37: #{tpu_custom_call.1} parent=1 // pred_fallthru
      _
    %p84 = scmp.eq.s32.totalorder 0, 0
    // Predicated region
    $region38: #{tpu_custom_call.1} parent=1 // pred_check
      %p85 = pneg %p84
    $region39: #{tpu_custom_call.1} parent=1 // pred_check_branch
      %87 = sbr.rel (%p85) target = $region41
    $region40: #{tpu_custom_call.1} parent=1 // pred_region
      %88 = vst [vmem:[#allocation2] sm:$0xff] 0.0
      %89 = vst [vmem:[#allocation2 + $0x8] sm:$0xff] 0.0
      %90 = vst [vmem:[#allocation2 + $0x10] sm:$0xff] 0.0
      %91 = vst [vmem:[#allocation2 + $0x18] sm:$0xff] 0.0
      %92 = vst [vmem:[#allocation2 + $0x20] sm:$0xff] 0.0
      %93 = vst [vmem:[#allocation2 + $0x28] sm:$0xff] 0.0
      %94 = vst [vmem:[#allocation2 + $0x30] sm:$0xff] 0.0
      %95 = vst [vmem:[#allocation2 + $0x38] sm:$0xff] 0.0
      %96 = vst [vmem:[#allocation2 + $0x40] sm:$0xff] 0.0
      %97 = vst [vmem:[#allocation2 + $0x48] sm:$0xff] 0.0
      %98 = vst [vmem:[#allocation2 + $0x50] sm:$0xff] 0.0
      %99 = vst [vmem:[#allocation2 + $0x58] sm:$0xff] 0.0
      %100 = vst [vmem:[#allocation2 + $0x60] sm:$0xff] 0.0
      %101 = vst [vmem:[#allocation2 + $0x68] sm:$0xff] 0.0
      %102 = vst [vmem:[#allocation2 + $0x70] sm:$0xff] 0.0
      %103 = vst [vmem:[#allocation2 + $0x78] sm:$0xff] 0.0
    $region41: #{tpu_custom_call.1} parent=1 // pred_fallthru
      _
    %v104 = vld [vmem:[#allocation2] sm:$0xff]
    %v105 = vld [vmem:[#allocation2 + $0x8] sm:$0xff]
    %v106 = vld [vmem:[#allocation2 + $0x10] sm:$0xff]
    %v107 = vld [vmem:[#allocation2 + $0x18] sm:$0xff]
    %v108 = vld [vmem:[#allocation2 + $0x20] sm:$0xff]
    %v109 = vld [vmem:[#allocation2 + $0x28] sm:$0xff]
    %v110 = vld [vmem:[#allocation2 + $0x30] sm:$0xff]
    %v111 = vld [vmem:[#allocation2 + $0x38] sm:$0xff]
    %v112 = vld [vmem:[#allocation2 + $0x40] sm:$0xff]
    %v113 = vld [vmem:[#allocation2 + $0x48] sm:$0xff]
    %v114 = vld [vmem:[#allocation2 + $0x50] sm:$0xff]
    %v115 = vld [vmem:[#allocation2 + $0x58] sm:$0xff]
    %v116 = vld [vmem:[#allocation2 + $0x60] sm:$0xff]
    %v117 = vld [vmem:[#allocation2 + $0x68] sm:$0xff]
    %v118 = vld [vmem:[#allocation2 + $0x70] sm:$0xff]
    %v119 = vld [vmem:[#allocation2 + $0x78] sm:$0xff]
    %v120 = vld [vmem:[#allocation3] sm:$0xff]
    %v121 = vld [vmem:[#allocation3 + $0x8] sm:$0xff]
    %v122 = vld [vmem:[#allocation3 + $0x10] sm:$0xff]
    %v123 = vld [vmem:[#allocation3 + $0x18] sm:$0xff]
    %v124 = vld [vmem:[#allocation3 + $0x20] sm:$0xff]
    %v125 = vld [vmem:[#allocation3 + $0x28] sm:$0xff]
    %v126 = vld [vmem:[#allocation3 + $0x30] sm:$0xff]
    %v127 = vld [vmem:[#allocation3 + $0x38] sm:$0xff]
    %v128 = vld [vmem:[#allocation3 + $0x40] sm:$0xff]
    %v129 = vld [vmem:[#allocation3 + $0x48] sm:$0xff]
    %v130 = vld [vmem:[#allocation3 + $0x50] sm:$0xff]
    %v131 = vld [vmem:[#allocation3 + $0x58] sm:$0xff]
    %v132 = vld [vmem:[#allocation3 + $0x60] sm:$0xff]
    %v133 = vld [vmem:[#allocation3 + $0x68] sm:$0xff]
    %v134 = vld [vmem:[#allocation3 + $0x70] sm:$0xff]
    %v135 = vld [vmem:[#allocation3 + $0x78] sm:$0xff]
    %v136 = vld [vmem:[#allocation6] sm:$0xff]
    %v137 = vld [vmem:[#allocation6 + $0x8] sm:$0xff]
    %v138 = vld [vmem:[#allocation6 + $0x10] sm:$0xff]
    %v139 = vld [vmem:[#allocation6 + $0x18] sm:$0xff]
    %v140 = vld [vmem:[#allocation6 + $0x20] sm:$0xff]
    %v141 = vld [vmem:[#allocation6 + $0x28] sm:$0xff]
    %v142 = vld [vmem:[#allocation6 + $0x30] sm:$0xff]
    %v143 = vld [vmem:[#allocation6 + $0x38] sm:$0xff]
    %v144 = vld [vmem:[#allocation6 + $0x40] sm:$0xff]
    %v145 = vld [vmem:[#allocation6 + $0x48] sm:$0xff]
    %v146 = vld [vmem:[#allocation6 + $0x50] sm:$0xff]
    %v147 = vld [vmem:[#allocation6 + $0x58] sm:$0xff]
    %v148 = vld [vmem:[#allocation6 + $0x60] sm:$0xff]
    %v149 = vld [vmem:[#allocation6 + $0x68] sm:$0xff]
    %v150 = vld [vmem:[#allocation6 + $0x70] sm:$0xff]
    %v151 = vld [vmem:[#allocation6 + $0x78] sm:$0xff]
    %152 = vmatpush.msra.mxu0 %v151
    %153 = vmatpush.msra.mxu0 %v150
    %154 = vmatpush.msra.mxu0 %v149
    %155 = vmatpush.msra.mxu0 %v148
    %156 = vmatpush.msra.mxu0 %v147
    %157 = vmatpush.msra.mxu0 %v146
    %158 = vmatpush.msra.mxu0 %v145
    %159 = vmatpush.msra.mxu0 %v144
    %160 = vmatpush.msra.mxu0 %v143
    %161 = vmatpush.msra.mxu0 %v142
    %162 = vmatpush.msra.mxu0 %v141
    %163 = vmatpush.msra.mxu0 %v140
    %164 = vmatpush.msra.mxu0 %v139
    %165 = vmatpush.msra.mxu0 %v138
    %166 = vmatpush.msra.mxu0 %v137
    %167 = vmatpush.msra.mxu0 %v136
    %168 = vmatmul.f32.gmra.mxu0 %v120
    %v169 = vpop.f32.mrf.mxu0
    %v170 = vadd.f32 0.0, %v169
    %171 = vmatmul.f32.gmra.mxu0 %v121
    %v172 = vpop.f32.mrf.mxu0
    %v173 = vadd.f32 0.0, %v172
    %174 = vmatmul.f32.gmra.mxu0 %v122
    %v175 = vpop.f32.mrf.mxu0
    %v176 = vadd.f32 0.0, %v175
    %177 = vmatmul.f32.gmra.mxu0 %v123
    %v178 = vpop.f32.mrf.mxu0
    %v179 = vadd.f32 0.0, %v178
    %180 = vmatmul.f32.gmra.mxu0 %v124
    %v181 = vpop.f32.mrf.mxu0
    %v182 = vadd.f32 0.0, %v181
    %183 = vmatmul.f32.gmra.mxu0 %v125
    %v184 = vpop.f32.mrf.mxu0
    %v185 = vadd.f32 0.0, %v184
    %186 = vmatmul.f32.gmra.mxu0 %v126
    %v187 = vpop.f32.mrf.mxu0
    %v188 = vadd.f32 0.0, %v187
    %189 = vmatmul.f32.gmra.mxu0 %v127
    %v190 = vpop.f32.mrf.mxu0
    %v191 = vadd.f32 0.0, %v190
    %192 = vmatmul.f32.gmra.mxu0 %v128
    %v193 = vpop.f32.mrf.mxu0
    %v194 = vadd.f32 0.0, %v193
    %195 = vmatmul.f32.gmra.mxu0 %v129
    %v196 = vpop.f32.mrf.mxu0
    %v197 = vadd.f32 0.0, %v196
    %198 = vmatmul.f32.gmra.mxu0 %v130
    %v199 = vpop.f32.mrf.mxu0
    %v200 = vadd.f32 0.0, %v199
    %201 = vmatmul.f32.gmra.mxu0 %v131
    %v202 = vpop.f32.mrf.mxu0
    %v203 = vadd.f32 0.0, %v202
    %204 = vmatmul.f32.gmra.mxu0 %v132
    %v205 = vpop.f32.mrf.mxu0
    %v206 = vadd.f32 0.0, %v205
    %207 = vmatmul.f32.gmra.mxu0 %v133
    %v208 = vpop.f32.mrf.mxu0
    %v209 = vadd.f32 0.0, %v208
    %210 = vmatmul.f32.gmra.mxu0 %v134
    %v211 = vpop.f32.mrf.mxu0
    %v212 = vadd.f32 0.0, %v211
    %213 = vmatmul.f32.gmra.mxu0 %v135
    %v214 = vpop.f32.mrf.mxu0
    %v215 = vadd.f32 0.0, %v214
    %216 = vdwg.mxu0
    %v217 = vadd.f32 %v104, %v170
    %v218 = vadd.f32 %v105, %v173
    %v219 = vadd.f32 %v106, %v176
    %v220 = vadd.f32 %v107, %v179
    %v221 = vadd.f32 %v108, %v182
    %v222 = vadd.f32 %v109, %v185
    %v223 = vadd.f32 %v110, %v188
    %v224 = vadd.f32 %v111, %v191
    %v225 = vadd.f32 %v112, %v194
    %v226 = vadd.f32 %v113, %v197
    %v227 = vadd.f32 %v114, %v200
    %v228 = vadd.f32 %v115, %v203
    %v229 = vadd.f32 %v116, %v206
    %v230 = vadd.f32 %v117, %v209
    %v231 = vadd.f32 %v118, %v212
    %v232 = vadd.f32 %v119, %v215
    %233 = vst [vmem:[#allocation2] sm:$0xff] %v217
    %234 = vst [vmem:[#allocation2 + $0x8] sm:$0xff] %v218
    %235 = vst [vmem:[#allocation2 + $0x10] sm:$0xff] %v219
    %236 = vst [vmem:[#allocation2 + $0x18] sm:$0xff] %v220
    %237 = vst [vmem:[#allocation2 + $0x20] sm:$0xff] %v221
    %238 = vst [vmem:[#allocation2 + $0x28] sm:$0xff] %v222
    %239 = vst [vmem:[#allocation2 + $0x30] sm:$0xff] %v223
    %240 = vst [vmem:[#allocation2 + $0x38] sm:$0xff] %v224
    %241 = vst [vmem:[#allocation2 + $0x40] sm:$0xff] %v225
    %242 = vst [vmem:[#allocation2 + $0x48] sm:$0xff] %v226
    %243 = vst [vmem:[#allocation2 + $0x50] sm:$0xff] %v227
    %244 = vst [vmem:[#allocation2 + $0x58] sm:$0xff] %v228
    %245 = vst [vmem:[#allocation2 + $0x60] sm:$0xff] %v229
    %246 = vst [vmem:[#allocation2 + $0x68] sm:$0xff] %v230
    %247 = vst [vmem:[#allocation2 + $0x70] sm:$0xff] %v231
    %248 = vst [vmem:[#allocation2 + $0x78] sm:$0xff] %v232
    // Predicated region
    $region42: #{tpu_custom_call.1} parent=1 // pred_check
      %p249 = pneg %p84
    $region43: #{tpu_custom_call.1} parent=1 // pred_check_branch
      %251 = sbr.rel (%p249) target = $region45
    $region44: #{tpu_custom_call.1} parent=1 // pred_region
      %v252 = vld [vmem:[#allocation2] sm:$0xff]
      %v253 = vld [vmem:[#allocation2 + $0x8] sm:$0xff]
      %v254 = vld [vmem:[#allocation2 + $0x10] sm:$0xff]
      %v255 = vld [vmem:[#allocation2 + $0x18] sm:$0xff]
      %v256 = vld [vmem:[#allocation2 + $0x20] sm:$0xff]
      %v257 = vld [vmem:[#allocation2 + $0x28] sm:$0xff]
      %v258 = vld [vmem:[#allocation2 + $0x30] sm:$0xff]
      %v259 = vld [vmem:[#allocation2 + $0x38] sm:$0xff]
      %v260 = vld [vmem:[#allocation2 + $0x40] sm:$0xff]
      %v261 = vld [vmem:[#allocation2 + $0x48] sm:$0xff]
      %v262 = vld [vmem:[#allocation2 + $0x50] sm:$0xff]
      %v263 = vld [vmem:[#allocation2 + $0x58] sm:$0xff]
      %v264 = vld [vmem:[#allocation2 + $0x60] sm:$0xff]
      %v265 = vld [vmem:[#allocation2 + $0x68] sm:$0xff]
      %v266 = vld [vmem:[#allocation2 + $0x70] sm:$0xff]
      %v267 = vld [vmem:[#allocation2 + $0x78] sm:$0xff]
      %v268 = vld [vmem:[#allocation8] sm:$0xff]
      %v269 = vld [vmem:[#allocation8 + $0x8] sm:$0xff]
      %v270 = vld [vmem:[#allocation8 + $0x10] sm:$0xff]
      %v271 = vld [vmem:[#allocation8 + $0x18] sm:$0xff]
      %v272 = vld [vmem:[#allocation8 + $0x20] sm:$0xff]
      %v273 = vld [vmem:[#allocation8 + $0x28] sm:$0xff]
      %v274 = vld [vmem:[#allocation8 + $0x30] sm:$0xff]
      %v275 = vld [vmem:[#allocation8 + $0x38] sm:$0xff]
      %v276 = vld [vmem:[#allocation8 + $0x40] sm:$0xff]
      %v277 = vld [vmem:[#allocation8 + $0x48] sm:$0xff]
      %v278 = vld [vmem:[#allocation8 + $0x50] sm:$0xff]
      %v279 = vld [vmem:[#allocation8 + $0x58] sm:$0xff]
      %v280 = vld [vmem:[#allocation8 + $0x60] sm:$0xff]
      %v281 = vld [vmem:[#allocation8 + $0x68] sm:$0xff]
      %v282 = vld [vmem:[#allocation8 + $0x70] sm:$0xff]
      %v283 = vld [vmem:[#allocation8 + $0x78] sm:$0xff]
      %v284 = vld [vmem:[#allocation8 + $0x80] sm:$0xff]
      %v285 = vld [vmem:[#allocation8 + $0x88] sm:$0xff]
      %v286 = vld [vmem:[#allocation8 + $0x90] sm:$0xff]
      %v287 = vld [vmem:[#allocation8 + $0x98] sm:$0xff]
      %v288 = vld [vmem:[#allocation8 + $0xa0] sm:$0xff]
      %v289 = vld [vmem:[#allocation8 + $0xa8] sm:$0xff]
      %v290 = vld [vmem:[#allocation8 + $0xb0] sm:$0xff]
      %v291 = vld [vmem:[#allocation8 + $0xb8] sm:$0xff]
      %v292 = vld [vmem:[#allocation8 + $0xc0] sm:$0xff]
      %v293 = vld [vmem:[#allocation8 + $0xc8] sm:$0xff]
      %v294 = vld [vmem:[#allocation8 + $0xd0] sm:$0xff]
      %v295 = vld [vmem:[#allocation8 + $0xd8] sm:$0xff]
      %v296 = vld [vmem:[#allocation8 + $0xe0] sm:$0xff]
      %v297 = vld [vmem:[#allocation8 + $0xe8] sm:$0xff]
      %v298 = vld [vmem:[#allocation8 + $0xf0] sm:$0xff]
      %v299 = vld [vmem:[#allocation8 + $0xf8] sm:$0xff]
      %v300 = vld [vmem:[%s3] sm:$0x3]
      %v302 = vperm.slane %v300, 0
      %v303 = vperm.slane %v300, 1
      %306 = vmatpush.msra.mxu0 %v298
      %307 = vmatpush.msra.mxu0 %v296
      %308 = vmatpush.msra.mxu0 %v294
      %309 = vmatpush.msra.mxu0 %v292
      %310 = vmatpush.msra.mxu0 %v290
      %311 = vmatpush.msra.mxu0 %v288
      %312 = vmatpush.msra.mxu0 %v286
      %313 = vmatpush.msra.mxu0 %v284
      %314 = vmatpush.msra.mxu0 %v282
      %315 = vmatpush.msra.mxu0 %v280
      %316 = vmatpush.msra.mxu0 %v278
      %317 = vmatpush.msra.mxu0 %v276
      %318 = vmatpush.msra.mxu0 %v274
      %319 = vmatpush.msra.mxu0 %v272
      %320 = vmatpush.msra.mxu0 %v270
      %321 = vmatpush.msra.mxu0 %v268
      %322 = vmatmul.f32.gmra.mxu0 %v252
      %v323 = vpop.f32.mrf.mxu0
      %v324 = vadd.f32 %v302, %v323
      %325 = vmatmul.f32.gmra.mxu0 %v253
      %v326 = vpop.f32.mrf.mxu0
      %v327 = vadd.f32 %v302, %v326
      %328 = vmatmul.f32.gmra.mxu0 %v254
      %v329 = vpop.f32.mrf.mxu0
      %v330 = vadd.f32 %v302, %v329
      %331 = vmatmul.f32.gmra.mxu0 %v255
      %v332 = vpop.f32.mrf.mxu0
      %v333 = vadd.f32 %v302, %v332
      %334 = vmatmul.f32.gmra.mxu0 %v256
      %v335 = vpop.f32.mrf.mxu0
      %v336 = vadd.f32 %v302, %v335
      %337 = vmatmul.f32.gmra.mxu0 %v257
      %v338 = vpop.f32.mrf.mxu0
      %v339 = vadd.f32 %v302, %v338
      %340 = vmatmul.f32.gmra.mxu0 %v258
      %v341 = vpop.f32.mrf.mxu0
      %v342 = vadd.f32 %v302, %v341
      %343 = vmatmul.f32.gmra.mxu0 %v259
      %v344 = vpop.f32.mrf.mxu0
      %v345 = vadd.f32 %v302, %v344
      %346 = vmatmul.f32.gmra.mxu0 %v260
      %v347 = vpop.f32.mrf.mxu0
      %v348 = vadd.f32 %v302, %v347
      %349 = vmatmul.f32.gmra.mxu0 %v261
      %v350 = vpop.f32.mrf.mxu0
      %v351 = vadd.f32 %v302, %v350
      %352 = vmatmul.f32.gmra.mxu0 %v262
      %v353 = vpop.f32.mrf.mxu0
      %v354 = vadd.f32 %v302, %v353
      %355 = vmatmul.f32.gmra.mxu0 %v263
      %v356 = vpop.f32.mrf.mxu0
      %v357 = vadd.f32 %v302, %v356
      %358 = vmatmul.f32.gmra.mxu0 %v264
      %v359 = vpop.f32.mrf.mxu0
      %v360 = vadd.f32 %v302, %v359
      %361 = vmatmul.f32.gmra.mxu0 %v265
      %v362 = vpop.f32.mrf.mxu0
      %v363 = vadd.f32 %v302, %v362
      %364 = vmatmul.f32.gmra.mxu0 %v266
      %v365 = vpop.f32.mrf.mxu0
      %v366 = vadd.f32 %v302, %v365
      %367 = vmatmul.f32.gmra.mxu0 %v267
      %v368 = vpop.f32.mrf.mxu0
      %v369 = vadd.f32 %v302, %v368
      %370 = vdwg.mxu0
      %371 = vmatpush.msra.mxu0 %v299
      %372 = vmatpush.msra.mxu0 %v297
      %373 = vmatpush.msra.mxu0 %v295
      %374 = vmatpush.msra.mxu0 %v293
      %375 = vmatpush.msra.mxu0 %v291
      %376 = vmatpush.msra.mxu0 %v289
      %377 = vmatpush.msra.mxu0 %v287
      %378 = vmatpush.msra.mxu0 %v285
      %379 = vmatpush.msra.mxu0 %v283
      %380 = vmatpush.msra.mxu0 %v281
      %381 = vmatpush.msra.mxu0 %v279
      %382 = vmatpush.msra.mxu0 %v277
      %383 = vmatpush.msra.mxu0 %v275
      %384 = vmatpush.msra.mxu0 %v273
      %385 = vmatpush.msra.mxu0 %v271
      %386 = vmatpush.msra.mxu0 %v269
      %387 = vmatmul.f32.gmra.mxu0 %v252
      %v388 = vpop.f32.mrf.mxu0
      %v389 = vadd.f32 %v303, %v388
      %390 = vmatmul.f32.gmra.mxu0 %v253
      %v391 = vpop.f32.mrf.mxu0
      %v392 = vadd.f32 %v303, %v391
      %393 = vmatmul.f32.gmra.mxu0 %v254
      %v394 = vpop.f32.mrf.mxu0
      %v395 = vadd.f32 %v303, %v394
      %396 = vmatmul.f32.gmra.mxu0 %v255
      %v397 = vpop.f32.mrf.mxu0
      %v398 = vadd.f32 %v303, %v397
      %399 = vmatmul.f32.gmra.mxu0 %v256
      %v400 = vpop.f32.mrf.mxu0
      %v401 = vadd.f32 %v303, %v400
      %402 = vmatmul.f32.gmra.mxu0 %v257
      %v403 = vpop.f32.mrf.mxu0
      %v404 = vadd.f32 %v303, %v403
      %405 = vmatmul.f32.gmra.mxu0 %v258
      %v406 = vpop.f32.mrf.mxu0
      %v407 = vadd.f32 %v303, %v406
      %408 = vmatmul.f32.gmra.mxu0 %v259
      %v409 = vpop.f32.mrf.mxu0
      %v410 = vadd.f32 %v303, %v409
      %411 = vmatmul.f32.gmra.mxu0 %v260
      %v412 = vpop.f32.mrf.mxu0
      %v413 = vadd.f32 %v303, %v412
      %414 = vmatmul.f32.gmra.mxu0 %v261
      %v415 = vpop.f32.mrf.mxu0
      %v416 = vadd.f32 %v303, %v415
      %417 = vmatmul.f32.gmra.mxu0 %v262
      %v418 = vpop.f32.mrf.mxu0
      %v419 = vadd.f32 %v303, %v418
      %420 = vmatmul.f32.gmra.mxu0 %v263
      %v421 = vpop.f32.mrf.mxu0
      %v422 = vadd.f32 %v303, %v421
      %423 = vmatmul.f32.gmra.mxu0 %v264
      %v424 = vpop.f32.mrf.mxu0
      %v425 = vadd.f32 %v303, %v424
      %426 = vmatmul.f32.gmra.mxu0 %v265
      %v427 = vpop.f32.mrf.mxu0
      %v428 = vadd.f32 %v303, %v427
      %429 = vmatmul.f32.gmra.mxu0 %v266
      %v430 = vpop.f32.mrf.mxu0
      %v431 = vadd.f32 %v303, %v430
      %432 = vmatmul.f32.gmra.mxu0 %v267
      %v433 = vpop.f32.mrf.mxu0
      %v434 = vadd.f32 %v303, %v433
      %435 = vdwg.mxu0
      %v436 = vmin.f32 %v389, 10.0
      %v437 = vmin.f32 %v392, 10.0
      %v438 = vmin.f32 %v395, 10.0
      %v439 = vmin.f32 %v398, 10.0
      %v440 = vmin.f32 %v401, 10.0
      %v441 = vmin.f32 %v404, 10.0
      %v442 = vmin.f32 %v407, 10.0
      %v443 = vmin.f32 %v410, 10.0
      %v444 = vmin.f32 %v413, 10.0
      %v445 = vmin.f32 %v416, 10.0
      %v446 = vmin.f32 %v419, 10.0
      %v447 = vmin.f32 %v422, 10.0
      %v448 = vmin.f32 %v425, 10.0
      %v449 = vmin.f32 %v428, 10.0
      %v450 = vmin.f32 %v431, 10.0
      %v451 = vmin.f32 %v434, 10.0
      %v452 = vld [vmem:[#allocation9] sm:$0xff]
      %v453 = vld [vmem:[#allocation9 + $0x8] sm:$0xff]
      %v454 = vld [vmem:[#allocation9 + $0x10] sm:$0xff]
      %v455 = vld [vmem:[#allocation9 + $0x18] sm:$0xff]
      %v456 = vld [vmem:[#allocation9 + $0x20] sm:$0xff]
      %v457 = vld [vmem:[#allocation9 + $0x28] sm:$0xff]
      %v458 = vld [vmem:[#allocation9 + $0x30] sm:$0xff]
      %v459 = vld [vmem:[#allocation9 + $0x38] sm:$0xff]
      %v460 = vld [vmem:[#allocation9 + $0x40] sm:$0xff]
      %v461 = vld [vmem:[#allocation9 + $0x48] sm:$0xff]
      %v462 = vld [vmem:[#allocation9 + $0x50] sm:$0xff]
      %v463 = vld [vmem:[#allocation9 + $0x58] sm:$0xff]
      %v464 = vld [vmem:[#allocation9 + $0x60] sm:$0xff]
      %v465 = vld [vmem:[#allocation9 + $0x68] sm:$0xff]
      %v466 = vld [vmem:[#allocation9 + $0x70] sm:$0xff]
      %v467 = vld [vmem:[#allocation9 + $0x78] sm:$0xff]
      %v468 = vmul.f32 %v436, 1.442695
      %v469 = vpow.pop %v468
      %v470 = vmul.f32 %v437, 1.442695
      %v471 = vpow.pop %v470
      %v472 = vmul.f32 %v438, 1.442695
      %v473 = vpow.pop %v472
      %v474 = vmul.f32 %v439, 1.442695
      %v475 = vpow.pop %v474
      %v476 = vmul.f32 %v440, 1.442695
      %v477 = vpow.pop %v476
      %v478 = vmul.f32 %v441, 1.442695
      %v479 = vpow.pop %v478
      %v480 = vmul.f32 %v442, 1.442695
      %v481 = vpow.pop %v480
      %v482 = vmul.f32 %v443, 1.442695
      %v483 = vpow.pop %v482
      %v484 = vmul.f32 %v444, 1.442695
      %v485 = vpow.pop %v484
      %v486 = vmul.f32 %v445, 1.442695
      %v487 = vpow.pop %v486
      %v488 = vmul.f32 %v446, 1.442695
      %v489 = vpow.pop %v488
      %v490 = vmul.f32 %v447, 1.442695
      %v491 = vpow.pop %v490
      %v492 = vmul.f32 %v448, 1.442695
      %v493 = vpow.pop %v492
      %v494 = vmul.f32 %v449, 1.442695
      %v495 = vpow.pop %v494
      %v496 = vmul.f32 %v450, 1.442695
      %v497 = vpow.pop %v496
      %v498 = vmul.f32 %v451, 1.442695
      %v499 = vpow.pop %v498
      %v500 = vmul.f32 %v452, %v469
      %v501 = vmul.f32 %v453, %v471
      %v502 = vmul.f32 %v454, %v473
      %v503 = vmul.f32 %v455, %v475
      %v504 = vmul.f32 %v456, %v477
      %v505 = vmul.f32 %v457, %v479
      %v506 = vmul.f32 %v458, %v481
      %v507 = vmul.f32 %v459, %v483
      %v508 = vmul.f32 %v460, %v485
      %v509 = vmul.f32 %v461, %v487
      %v510 = vmul.f32 %v462, %v489
      %v511 = vmul.f32 %v463, %v491
      %v512 = vmul.f32 %v464, %v493
      %v513 = vmul.f32 %v465, %v495
      %v514 = vmul.f32 %v466, %v497
      %v515 = vmul.f32 %v467, %v499
      %v516 = vadd.f32 %v324, %v500
      %v517 = vadd.f32 %v327, %v501
      %v518 = vadd.f32 %v330, %v502
      %v519 = vadd.f32 %v333, %v503
      %v520 = vadd.f32 %v336, %v504
      %v521 = vadd.f32 %v339, %v505
      %v522 = vadd.f32 %v342, %v506
      %v523 = vadd.f32 %v345, %v507
      %v524 = vadd.f32 %v348, %v508
      %v525 = vadd.f32 %v351, %v509
      %v526 = vadd.f32 %v354, %v510
      %v527 = vadd.f32 %v357, %v511
      %v528 = vadd.f32 %v360, %v512
      %v529 = vadd.f32 %v363, %v513
      %v530 = vadd.f32 %v366, %v514
      %v531 = vadd.f32 %v369, %v515
      %532 = vst [vmem:[#allocation11] sm:$0xff] %v516
      %533 = vst [vmem:[#allocation11 + $0x8] sm:$0xff] %v517
      %534 = vst [vmem:[#allocation11 + $0x10] sm:$0xff] %v518
      %535 = vst [vmem:[#allocation11 + $0x18] sm:$0xff] %v519
      %536 = vst [vmem:[#allocation11 + $0x20] sm:$0xff] %v520
      %537 = vst [vmem:[#allocation11 + $0x28] sm:$0xff] %v521
      %538 = vst [vmem:[#allocation11 + $0x30] sm:$0xff] %v522
      %539 = vst [vmem:[#allocation11 + $0x38] sm:$0xff] %v523
      %540 = vst [vmem:[#allocation11 + $0x40] sm:$0xff] %v524
      %541 = vst [vmem:[#allocation11 + $0x48] sm:$0xff] %v525
      %542 = vst [vmem:[#allocation11 + $0x50] sm:$0xff] %v526
      %543 = vst [vmem:[#allocation11 + $0x58] sm:$0xff] %v527
      %544 = vst [vmem:[#allocation11 + $0x60] sm:$0xff] %v528
      %545 = vst [vmem:[#allocation11 + $0x68] sm:$0xff] %v529
      %546 = vst [vmem:[#allocation11 + $0x70] sm:$0xff] %v530
      %547 = vst [vmem:[#allocation11 + $0x78] sm:$0xff] %v531
    $region45: #{tpu_custom_call.1} parent=1 // pred_fallthru
      _
    // Predicated region
    $region46: #{tpu_custom_call.1} parent=1 // pred_check
      _
    $region47: #{tpu_custom_call.1} parent=1 // pred_check_branch
      %549 = sbr.rel (0) target = $region49
    $region48: #{tpu_custom_call.1} parent=1 // pred_region
      %551 = vsyncadd [#allocation5], 0
      %s552 = sshll.u32 [#allocation11], 4
      %s553 = int_to_ptr.vmem [resolvable:$true] %s552
      %s554 = sshll.u32 %s5, 4
      %s555 = int_to_ptr.hbm [resolvable:$true] %s554
      %560 = dma.vmem_to_hbm [thread:$0]  %s553, 2048, %s555, [#allocation5], 128, 128, 8
    $region49: #{tpu_custom_call.1} parent=1 // pred_fallthru
      _
    // Predicated region
    $region50: #{tpu_custom_call.1} parent=1 // pred_check
      _
    $region51: #{tpu_custom_call.1} parent=1 // pred_check_branch
      %562 = sbr.rel (0) target = $region53
    $region52: #{tpu_custom_call.1} parent=1 // pred_region
      %564 = dma.done [#allocation5], 2048
    $region53: #{tpu_custom_call.1} parent=1 // pred_fallthru
      _
    %565 = vsyncpa [#allocation4], 1
    %566 = vsyncpa [#allocation7], 1
    %567 = vsyncpa [#allocation10], 1
    %568 = vsyncpa [#allocation5], 1

// kernel: tpu_custom_call.1
$region0: #{tpu_custom_call.1}
  #allocation0 [shape = 'u32[]', space=smem, size = 0x4, offset = 0x4, fixed_abs, tag = 'smem constant byte address 0x4 - core index']
  #allocation1 [shape = 'u32[72,128]{1,0:T(1,128)}', space=vmem, size = 0x9000, scoped, tag = 'internal scratch']
  #allocation2 [shape = 'f32[128,128]{1,0:T(8,128)}', space=vmem, size = 0x10000, scoped, tag = 'scratch operand']
  %s0 = inlined_call_operand.hbm [shape: f32[128,128], index: 0, kind: input, shape index: {}]
  %s1 = inlined_call_operand.hbm [shape: f32[128,128], index: 1, kind: input, shape index: {}]
  %s2 = inlined_call_operand.hbm [shape: f32[128,256], index: 2, kind: input, shape index: {}]
  %s3 = inlined_call_operand.vmem [shape: f32[1,256], index: 3, kind: input, shape index: {}]
  %s4 = inlined_call_operand.hbm [shape: f32[128,128], index: 4, kind: input, shape index: {}]
  %s5 = inlined_call_operand.hbm [shape: f32[128,128], index: 5, kind: output, shape index: {}]
  %s6 = sld [smem:[#allocation0]]
  $region54: #{tpu_custom_call.1} parent=0
    _
  %s8 = ssub.s32 1, %s6
  %s9 = scalar_select 0, %s8, %s6
  $region1: #{tpu_custom_call.1} parent=0
    #allocation3 [shape = 'u8[65536]{0}', space=vmem, size = 0x10000, scoped, tag = 'input window, operand 0, single buffered']
    #allocation4 [shape = 's32[1]{0}', space=sflag, size = 0x4, scoped, tag = 'scoped memory for tpu_custom_call.1']
    #allocation5 [shape = 's32[1]{0}', space=sflag, size = 0x4, scoped, tag = 'scoped memory for tpu_custom_call.1']
    #allocation6 [shape = 'u8[65536]{0}', space=vmem, size = 0x10000, scoped, tag = 'input window, operand 1, single buffered']
    #allocation7 [shape = 's32[1]{0}', space=sflag, size = 0x4, scoped, tag = 'scoped memory for tpu_custom_call.1']
    #allocation8 [shape = 'u8[131072]{0}', space=vmem, size = 0x20000, scoped, tag = 'input window, operand 2, single buffered']
    #allocation9 [shape = 'u8[65536]{0}', space=vmem, size = 0x10000, scoped, tag = 'input window, operand 4, single buffered']
    #allocation10 [shape = 's32[1]{0}', space=sflag, size = 0x4, scoped, tag = 'scoped memory for tpu_custom_call.1']
    #allocation11 [shape = 'u8[65536]{0}', space=vmem, size = 0x10000, scoped, tag = 'output window, operand 0, single buffered']
    %10 = vsyncpa [#allocation4], 0
    %11 = vsyncpa [#allocation7], 0
    %12 = vsyncpa [#allocation10], 0
    %13 = vsyncpa [#allocation5], 0
    // Predicated region
    $region2: #{tpu_custom_call.1} parent=1 // pred_check
      _
    $region3: #{tpu_custom_call.1} parent=1 // pred_check_branch
      %15 = sbr.rel (0) target = $region5
    $region4: #{tpu_custom_call.1} parent=1 // pred_region
      %17 = vsyncadd [#allocation4], 0
      %s18 = sshll.u32 %s0, 4
      %s19 = int_to_ptr.hbm [resolvable:$true] %s18
      %s20 = sshll.u32 [#allocation3], 4
      %s21 = int_to_ptr.vmem [resolvable:$true] %s20
      %26 = dma.hbm_to_vmem [thread:$0]  %s19, 2048, %s21, [#allocation4], 128, 128, 8
    $region5: #{tpu_custom_call.1} parent=1 // pred_fallthru
      _
    // Predicated region
    $region6: #{tpu_custom_call.1} parent=1 // pred_check
      _
    $region7: #{tpu_custom_call.1} parent=1 // pred_check_branch
      %28 = sbr.rel (0) target = $region9
    $region8: #{tpu_custom_call.1} parent=1 // pred_region
      %30 = vsyncadd [#allocation7], 0
      %s31 = sshll.u32 %s1, 4
      %s32 = int_to_ptr.hbm [resolvable:$true] %s31
      %s33 = sshll.u32 [#allocation6], 4
      %s34 = int_to_ptr.vmem [resolvable:$true] %s33
      %39 = dma.hbm_to_vmem [thread:$0]  %s32, 2048, %s34, [#allocation7], 128, 128, 8
    $region9: #{tpu_custom_call.1} parent=1 // pred_fallthru
      _
    // Predicated region
    $region10: #{tpu_custom_call.1} parent=1 // pred_check
      _
    $region11: #{tpu_custom_call.1} parent=1 // pred_check_branch
      %41 = sbr.rel (0) target = $region13
    $region12: #{tpu_custom_call.1} parent=1 // pred_region
      %43 = vsyncadd [#allocation7], 0
      %s44 = sshll.u32 %s2, 4
      %s45 = int_to_ptr.hbm [resolvable:$true] %s44
      %s46 = sshll.u32 [#allocation8], 4
      %s47 = int_to_ptr.vmem [resolvable:$true] %s46
      %52 = dma.hbm_to_vmem [thread:$0]  %s45, 4096, %s47, [#allocation7], 256, 256, 16
    $region13: #{tpu_custom_call.1} parent=1 // pred_fallthru
      _
    // Predicated region
    $region14: #{tpu_custom_call.1} parent=1 // pred_check
      _
    $region15: #{tpu_custom_call.1} parent=1 // pred_check_branch
      %54 = sbr.rel (0) target = $region17
    $region16: #{tpu_custom_call.1} parent=1 // pred_region
      _
    $region17: #{tpu_custom_call.1} parent=1 // pred_fallthru
      _
    // Predicated region
    $region18: #{tpu_custom_call.1} parent=1 // pred_check
      _
    $region19: #{tpu_custom_call.1} parent=1 // pred_check_branch
      %56 = sbr.rel (0) target = $region21
    $region20: #{tpu_custom_call.1} parent=1 // pred_region
      %58 = vsyncadd [#allocation10], 0
      %s59 = sshll.u32 %s4, 4
      %s60 = int_to_ptr.hbm [resolvable:$true] %s59
      %s61 = sshll.u32 [#allocation9], 4
      %s62 = int_to_ptr.vmem [resolvable:$true] %s61
      %67 = dma.hbm_to_vmem [thread:$0]  %s60, 2048, %s62, [#allocation10], 128, 128, 8
    $region21: #{tpu_custom_call.1} parent=1 // pred_fallthru
      _
    // Predicated region
    $region22: #{tpu_custom_call.1} parent=1 // pred_check
      _
    $region23: #{tpu_custom_call.1} parent=1 // pred_check_branch
      %69 = sbr.rel (0) target = $region25
    $region24: #{tpu_custom_call.1} parent=1 // pred_region
      %71 = dma.done [#allocation4], 2048
    $region25: #{tpu_custom_call.1} parent=1 // pred_fallthru
      _
    // Predicated region
    $region26: #{tpu_custom_call.1} parent=1 // pred_check
      _
    $region27: #{tpu_custom_call.1} parent=1 // pred_check_branch
      %73 = sbr.rel (0) target = $region29
    $region28: #{tpu_custom_call.1} parent=1 // pred_region
      %75 = dma.done [#allocation7], 2048
    $region29: #{tpu_custom_call.1} parent=1 // pred_fallthru
      _
    // Predicated region
    $region30: #{tpu_custom_call.1} parent=1 // pred_check
      _
    $region31: #{tpu_custom_call.1} parent=1 // pred_check_branch
      %77 = sbr.rel (0) target = $region33
    $region32: #{tpu_custom_call.1} parent=1 // pred_region
      %79 = dma.done [#allocation7], 4096
    $region33: #{tpu_custom_call.1} parent=1 // pred_fallthru
      _
    // Predicated region
    $region34: #{tpu_custom_call.1} parent=1 // pred_check
      _
    $region35: #{tpu_custom_call.1} parent=1 // pred_check_branch
      %81 = sbr.rel (0) target = $region37
    $region36: #{tpu_custom_call.1} parent=1 // pred_region
      %83 = dma.done [#allocation10], 2048
    $region37: #{tpu_custom_call.1} parent=1 // pred_fallthru
      _
    %p84 = scmp.eq.s32.totalorder 0, 0
    // Predicated region
    $region38: #{tpu_custom_call.1} parent=1 // pred_check
      %p85 = pneg %p84
    $region39: #{tpu_custom_call.1} parent=1 // pred_check_branch
      %87 = sbr.rel (%p85) target = $region41
    $region40: #{tpu_custom_call.1} parent=1 // pred_region
      %88 = vst [vmem:[#allocation2] sm:$0xff] 0.0
      %89 = vst [vmem:[#allocation2 + $0x8] sm:$0xff] 0.0
      %90 = vst [vmem:[#allocation2 + $0x10] sm:$0xff] 0.0
      %91 = vst [vmem:[#allocation2 + $0x18] sm:$0xff] 0.0
      %92 = vst [vmem:[#allocation2 + $0x20] sm:$0xff] 0.0
      %93 = vst [vmem:[#allocation2 + $0x28] sm:$0xff] 0.0
      %94 = vst [vmem:[#allocation2 + $0x30] sm:$0xff] 0.0
      %95 = vst [vmem:[#allocation2 + $0x38] sm:$0xff] 0.0
      %96 = vst [vmem:[#allocation2 + $0x40] sm:$0xff] 0.0
      %97 = vst [vmem:[#allocation2 + $0x48] sm:$0xff] 0.0
      %98 = vst [vmem:[#allocation2 + $0x50] sm:$0xff] 0.0
      %99 = vst [vmem:[#allocation2 + $0x58] sm:$0xff] 0.0
      %100 = vst [vmem:[#allocation2 + $0x60] sm:$0xff] 0.0
      %101 = vst [vmem:[#allocation2 + $0x68] sm:$0xff] 0.0
      %102 = vst [vmem:[#allocation2 + $0x70] sm:$0xff] 0.0
      %103 = vst [vmem:[#allocation2 + $0x78] sm:$0xff] 0.0
    $region41: #{tpu_custom_call.1} parent=1 // pred_fallthru
      _
    %v104 = vld [vmem:[#allocation2] sm:$0xff]
    %v105 = vld [vmem:[#allocation2 + $0x8] sm:$0xff]
    %v106 = vld [vmem:[#allocation2 + $0x10] sm:$0xff]
    %v107 = vld [vmem:[#allocation2 + $0x18] sm:$0xff]
    %v108 = vld [vmem:[#allocation2 + $0x20] sm:$0xff]
    %v109 = vld [vmem:[#allocation2 + $0x28] sm:$0xff]
    %v110 = vld [vmem:[#allocation2 + $0x30] sm:$0xff]
    %v111 = vld [vmem:[#allocation2 + $0x38] sm:$0xff]
    %v112 = vld [vmem:[#allocation2 + $0x40] sm:$0xff]
    %v113 = vld [vmem:[#allocation2 + $0x48] sm:$0xff]
    %v114 = vld [vmem:[#allocation2 + $0x50] sm:$0xff]
    %v115 = vld [vmem:[#allocation2 + $0x58] sm:$0xff]
    %v116 = vld [vmem:[#allocation2 + $0x60] sm:$0xff]
    %v117 = vld [vmem:[#allocation2 + $0x68] sm:$0xff]
    %v118 = vld [vmem:[#allocation2 + $0x70] sm:$0xff]
    %v119 = vld [vmem:[#allocation2 + $0x78] sm:$0xff]
    %v120 = vld [vmem:[#allocation3] sm:$0xff]
    %v121 = vld [vmem:[#allocation3 + $0x8] sm:$0xff]
    %v122 = vld [vmem:[#allocation3 + $0x10] sm:$0xff]
    %v123 = vld [vmem:[#allocation3 + $0x18] sm:$0xff]
    %v124 = vld [vmem:[#allocation3 + $0x20] sm:$0xff]
    %v125 = vld [vmem:[#allocation3 + $0x28] sm:$0xff]
    %v126 = vld [vmem:[#allocation3 + $0x30] sm:$0xff]
    %v127 = vld [vmem:[#allocation3 + $0x38] sm:$0xff]
    %v128 = vld [vmem:[#allocation3 + $0x40] sm:$0xff]
    %v129 = vld [vmem:[#allocation3 + $0x48] sm:$0xff]
    %v130 = vld [vmem:[#allocation3 + $0x50] sm:$0xff]
    %v131 = vld [vmem:[#allocation3 + $0x58] sm:$0xff]
    %v132 = vld [vmem:[#allocation3 + $0x60] sm:$0xff]
    %v133 = vld [vmem:[#allocation3 + $0x68] sm:$0xff]
    %v134 = vld [vmem:[#allocation3 + $0x70] sm:$0xff]
    %v135 = vld [vmem:[#allocation3 + $0x78] sm:$0xff]
    %v136 = vld [vmem:[#allocation6] sm:$0xff]
    %v137 = vld [vmem:[#allocation6 + $0x8] sm:$0xff]
    %v138 = vld [vmem:[#allocation6 + $0x10] sm:$0xff]
    %v139 = vld [vmem:[#allocation6 + $0x18] sm:$0xff]
    %v140 = vld [vmem:[#allocation6 + $0x20] sm:$0xff]
    %v141 = vld [vmem:[#allocation6 + $0x28] sm:$0xff]
    %v142 = vld [vmem:[#allocation6 + $0x30] sm:$0xff]
    %v143 = vld [vmem:[#allocation6 + $0x38] sm:$0xff]
    %v144 = vld [vmem:[#allocation6 + $0x40] sm:$0xff]
    %v145 = vld [vmem:[#allocation6 + $0x48] sm:$0xff]
    %v146 = vld [vmem:[#allocation6 + $0x50] sm:$0xff]
    %v147 = vld [vmem:[#allocation6 + $0x58] sm:$0xff]
    %v148 = vld [vmem:[#allocation6 + $0x60] sm:$0xff]
    %v149 = vld [vmem:[#allocation6 + $0x68] sm:$0xff]
    %v150 = vld [vmem:[#allocation6 + $0x70] sm:$0xff]
    %v151 = vld [vmem:[#allocation6 + $0x78] sm:$0xff]
    %152 = vmatpush.msra.mxu0 %v151
    %153 = vmatpush.msra.mxu0 %v150
    %154 = vmatpush.msra.mxu0 %v149
    %155 = vmatpush.msra.mxu0 %v148
    %156 = vmatpush.msra.mxu0 %v147
    %157 = vmatpush.msra.mxu0 %v146
    %158 = vmatpush.msra.mxu0 %v145
    %159 = vmatpush.msra.mxu0 %v144
    %160 = vmatpush.msra.mxu0 %v143
    %161 = vmatpush.msra.mxu0 %v142
    %162 = vmatpush.msra.mxu0 %v141
    %163 = vmatpush.msra.mxu0 %v140
    %164 = vmatpush.msra.mxu0 %v139
    %165 = vmatpush.msra.mxu0 %v138
    %166 = vmatpush.msra.mxu0 %v137
    %167 = vmatpush.msra.mxu0 %v136
    %168 = vmatmul.f32.gmra.mxu0 %v120
    %v169 = vpop.f32.mrf.mxu0
    %v170 = vadd.f32 0.0, %v169
    %171 = vmatmul.f32.gmra.mxu0 %v121
    %v172 = vpop.f32.mrf.mxu0
    %v173 = vadd.f32 0.0, %v172
    %174 = vmatmul.f32.gmra.mxu0 %v122
    %v175 = vpop.f32.mrf.mxu0
    %v176 = vadd.f32 0.0, %v175
    %177 = vmatmul.f32.gmra.mxu0 %v123
    %v178 = vpop.f32.mrf.mxu0
    %v179 = vadd.f32 0.0, %v178
    %180 = vmatmul.f32.gmra.mxu0 %v124
    %v181 = vpop.f32.mrf.mxu0
    %v182 = vadd.f32 0.0, %v181
    %183 = vmatmul.f32.gmra.mxu0 %v125
    %v184 = vpop.f32.mrf.mxu0
    %v185 = vadd.f32 0.0, %v184
    %186 = vmatmul.f32.gmra.mxu0 %v126
    %v187 = vpop.f32.mrf.mxu0
    %v188 = vadd.f32 0.0, %v187
    %189 = vmatmul.f32.gmra.mxu0 %v127
    %v190 = vpop.f32.mrf.mxu0
    %v191 = vadd.f32 0.0, %v190
    %192 = vmatmul.f32.gmra.mxu0 %v128
    %v193 = vpop.f32.mrf.mxu0
    %v194 = vadd.f32 0.0, %v193
    %195 = vmatmul.f32.gmra.mxu0 %v129
    %v196 = vpop.f32.mrf.mxu0
    %v197 = vadd.f32 0.0, %v196
    %198 = vmatmul.f32.gmra.mxu0 %v130
    %v199 = vpop.f32.mrf.mxu0
    %v200 = vadd.f32 0.0, %v199
    %201 = vmatmul.f32.gmra.mxu0 %v131
    %v202 = vpop.f32.mrf.mxu0
    %v203 = vadd.f32 0.0, %v202
    %204 = vmatmul.f32.gmra.mxu0 %v132
    %v205 = vpop.f32.mrf.mxu0
    %v206 = vadd.f32 0.0, %v205
    %207 = vmatmul.f32.gmra.mxu0 %v133
    %v208 = vpop.f32.mrf.mxu0
    %v209 = vadd.f32 0.0, %v208
    %210 = vmatmul.f32.gmra.mxu0 %v134
    %v211 = vpop.f32.mrf.mxu0
    %v212 = vadd.f32 0.0, %v211
    %213 = vmatmul.f32.gmra.mxu0 %v135
    %v214 = vpop.f32.mrf.mxu0
    %v215 = vadd.f32 0.0, %v214
    %216 = vdwg.mxu0
    %v217 = vadd.f32 %v104, %v170
    %v218 = vadd.f32 %v105, %v173
    %v219 = vadd.f32 %v106, %v176
    %v220 = vadd.f32 %v107, %v179
    %v221 = vadd.f32 %v108, %v182
    %v222 = vadd.f32 %v109, %v185
    %v223 = vadd.f32 %v110, %v188
    %v224 = vadd.f32 %v111, %v191
    %v225 = vadd.f32 %v112, %v194
    %v226 = vadd.f32 %v113, %v197
    %v227 = vadd.f32 %v114, %v200
    %v228 = vadd.f32 %v115, %v203
    %v229 = vadd.f32 %v116, %v206
    %v230 = vadd.f32 %v117, %v209
    %v231 = vadd.f32 %v118, %v212
    %v232 = vadd.f32 %v119, %v215
    %233 = vst [vmem:[#allocation2] sm:$0xff] %v217
    %234 = vst [vmem:[#allocation2 + $0x8] sm:$0xff] %v218
    %235 = vst [vmem:[#allocation2 + $0x10] sm:$0xff] %v219
    %236 = vst [vmem:[#allocation2 + $0x18] sm:$0xff] %v220
    %237 = vst [vmem:[#allocation2 + $0x20] sm:$0xff] %v221
    %238 = vst [vmem:[#allocation2 + $0x28] sm:$0xff] %v222
    %239 = vst [vmem:[#allocation2 + $0x30] sm:$0xff] %v223
    %240 = vst [vmem:[#allocation2 + $0x38] sm:$0xff] %v224
    %241 = vst [vmem:[#allocation2 + $0x40] sm:$0xff] %v225
    %242 = vst [vmem:[#allocation2 + $0x48] sm:$0xff] %v226
    %243 = vst [vmem:[#allocation2 + $0x50] sm:$0xff] %v227
    %244 = vst [vmem:[#allocation2 + $0x58] sm:$0xff] %v228
    %245 = vst [vmem:[#allocation2 + $0x60] sm:$0xff] %v229
    %246 = vst [vmem:[#allocation2 + $0x68] sm:$0xff] %v230
    %247 = vst [vmem:[#allocation2 + $0x70] sm:$0xff] %v231
    %248 = vst [vmem:[#allocation2 + $0x78] sm:$0xff] %v232
    // Predicated region
    $region42: #{tpu_custom_call.1} parent=1 // pred_check
      %p249 = pneg %p84
    $region43: #{tpu_custom_call.1} parent=1 // pred_check_branch
      %251 = sbr.rel (%p249) target = $region45
    $region44: #{tpu_custom_call.1} parent=1 // pred_region
      %v252 = vld [vmem:[#allocation2] sm:$0xff]
      %v253 = vld [vmem:[#allocation2 + $0x8] sm:$0xff]
      %v254 = vld [vmem:[#allocation2 + $0x10] sm:$0xff]
      %v255 = vld [vmem:[#allocation2 + $0x18] sm:$0xff]
      %v256 = vld [vmem:[#allocation2 + $0x20] sm:$0xff]
      %v257 = vld [vmem:[#allocation2 + $0x28] sm:$0xff]
      %v258 = vld [vmem:[#allocation2 + $0x30] sm:$0xff]
      %v259 = vld [vmem:[#allocation2 + $0x38] sm:$0xff]
      %v260 = vld [vmem:[#allocation2 + $0x40] sm:$0xff]
      %v261 = vld [vmem:[#allocation2 + $0x48] sm:$0xff]
      %v262 = vld [vmem:[#allocation2 + $0x50] sm:$0xff]
      %v263 = vld [vmem:[#allocation2 + $0x58] sm:$0xff]
      %v264 = vld [vmem:[#allocation2 + $0x60] sm:$0xff]
      %v265 = vld [vmem:[#allocation2 + $0x68] sm:$0xff]
      %v266 = vld [vmem:[#allocation2 + $0x70] sm:$0xff]
      %v267 = vld [vmem:[#allocation2 + $0x78] sm:$0xff]
      %v268 = vld [vmem:[#allocation8] sm:$0xff]
      %v269 = vld [vmem:[#allocation8 + $0x8] sm:$0xff]
      %v270 = vld [vmem:[#allocation8 + $0x10] sm:$0xff]
      %v271 = vld [vmem:[#allocation8 + $0x18] sm:$0xff]
      %v272 = vld [vmem:[#allocation8 + $0x20] sm:$0xff]
      %v273 = vld [vmem:[#allocation8 + $0x28] sm:$0xff]
      %v274 = vld [vmem:[#allocation8 + $0x30] sm:$0xff]
      %v275 = vld [vmem:[#allocation8 + $0x38] sm:$0xff]
      %v276 = vld [vmem:[#allocation8 + $0x40] sm:$0xff]
      %v277 = vld [vmem:[#allocation8 + $0x48] sm:$0xff]
      %v278 = vld [vmem:[#allocation8 + $0x50] sm:$0xff]
      %v279 = vld [vmem:[#allocation8 + $0x58] sm:$0xff]
      %v280 = vld [vmem:[#allocation8 + $0x60] sm:$0xff]
      %v281 = vld [vmem:[#allocation8 + $0x68] sm:$0xff]
      %v282 = vld [vmem:[#allocation8 + $0x70] sm:$0xff]
      %v283 = vld [vmem:[#allocation8 + $0x78] sm:$0xff]
      %v284 = vld [vmem:[#allocation8 + $0x80] sm:$0xff]
      %v285 = vld [vmem:[#allocation8 + $0x88] sm:$0xff]
      %v286 = vld [vmem:[#allocation8 + $0x90] sm:$0xff]
      %v287 = vld [vmem:[#allocation8 + $0x98] sm:$0xff]
      %v288 = vld [vmem:[#allocation8 + $0xa0] sm:$0xff]
      %v289 = vld [vmem:[#allocation8 + $0xa8] sm:$0xff]
      %v290 = vld [vmem:[#allocation8 + $0xb0] sm:$0xff]
      %v291 = vld [vmem:[#allocation8 + $0xb8] sm:$0xff]
      %v292 = vld [vmem:[#allocation8 + $0xc0] sm:$0xff]
      %v293 = vld [vmem:[#allocation8 + $0xc8] sm:$0xff]
      %v294 = vld [vmem:[#allocation8 + $0xd0] sm:$0xff]
      %v295 = vld [vmem:[#allocation8 + $0xd8] sm:$0xff]
      %v296 = vld [vmem:[#allocation8 + $0xe0] sm:$0xff]
      %v297 = vld [vmem:[#allocation8 + $0xe8] sm:$0xff]
      %v298 = vld [vmem:[#allocation8 + $0xf0] sm:$0xff]
      %v299 = vld [vmem:[#allocation8 + $0xf8] sm:$0xff]
      %v300 = vld [vmem:[%s3] sm:$0x3]
      %v302 = vperm.slane %v300, 0
      %v303 = vperm.slane %v300, 1
      %306 = vmatpush.msra.mxu0 %v298
      %307 = vmatpush.msra.mxu0 %v296
      %308 = vmatpush.msra.mxu0 %v294
      %309 = vmatpush.msra.mxu0 %v292
      %310 = vmatpush.msra.mxu0 %v290
      %311 = vmatpush.msra.mxu0 %v288
      %312 = vmatpush.msra.mxu0 %v286
      %313 = vmatpush.msra.mxu0 %v284
      %314 = vmatpush.msra.mxu0 %v282
      %315 = vmatpush.msra.mxu0 %v280
      %316 = vmatpush.msra.mxu0 %v278
      %317 = vmatpush.msra.mxu0 %v276
      %318 = vmatpush.msra.mxu0 %v274
      %319 = vmatpush.msra.mxu0 %v272
      %320 = vmatpush.msra.mxu0 %v270
      %321 = vmatpush.msra.mxu0 %v268
      %322 = vmatmul.f32.gmra.mxu0 %v252
      %v323 = vpop.f32.mrf.mxu0
      %v324 = vadd.f32 %v302, %v323
      %325 = vmatmul.f32.gmra.mxu0 %v253
      %v326 = vpop.f32.mrf.mxu0
      %v327 = vadd.f32 %v302, %v326
      %328 = vmatmul.f32.gmra.mxu0 %v254
      %v329 = vpop.f32.mrf.mxu0
      %v330 = vadd.f32 %v302, %v329
      %331 = vmatmul.f32.gmra.mxu0 %v255
      %v332 = vpop.f32.mrf.mxu0
      %v333 = vadd.f32 %v302, %v332
      %334 = vmatmul.f32.gmra.mxu0 %v256
      %v335 = vpop.f32.mrf.mxu0
      %v336 = vadd.f32 %v302, %v335
      %337 = vmatmul.f32.gmra.mxu0 %v257
      %v338 = vpop.f32.mrf.mxu0
      %v339 = vadd.f32 %v302, %v338
      %340 = vmatmul.f32.gmra.mxu0 %v258
      %v341 = vpop.f32.mrf.mxu0
      %v342 = vadd.f32 %v302, %v341
      %343 = vmatmul.f32.gmra.mxu0 %v259
      %v344 = vpop.f32.mrf.mxu0
      %v345 = vadd.f32 %v302, %v344
      %346 = vmatmul.f32.gmra.mxu0 %v260
      %v347 = vpop.f32.mrf.mxu0
      %v348 = vadd.f32 %v302, %v347
      %349 = vmatmul.f32.gmra.mxu0 %v261
      %v350 = vpop.f32.mrf.mxu0
      %v351 = vadd.f32 %v302, %v350
      %352 = vmatmul.f32.gmra.mxu0 %v262
      %v353 = vpop.f32.mrf.mxu0
      %v354 = vadd.f32 %v302, %v353
      %355 = vmatmul.f32.gmra.mxu0 %v263
      %v356 = vpop.f32.mrf.mxu0
      %v357 = vadd.f32 %v302, %v356
      %358 = vmatmul.f32.gmra.mxu0 %v264
      %v359 = vpop.f32.mrf.mxu0
      %v360 = vadd.f32 %v302, %v359
      %361 = vmatmul.f32.gmra.mxu0 %v265
      %v362 = vpop.f32.mrf.mxu0
      %v363 = vadd.f32 %v302, %v362
      %364 = vmatmul.f32.gmra.mxu0 %v266
      %v365 = vpop.f32.mrf.mxu0
      %v366 = vadd.f32 %v302, %v365
      %367 = vmatmul.f32.gmra.mxu0 %v267
      %v368 = vpop.f32.mrf.mxu0
      %v369 = vadd.f32 %v302, %v368
      %370 = vdwg.mxu0
      %371 = vmatpush.msra.mxu0 %v299
      %372 = vmatpush.msra.mxu0 %v297
      %373 = vmatpush.msra.mxu0 %v295
      %374 = vmatpush.msra.mxu0 %v293
      %375 = vmatpush.msra.mxu0 %v291
      %376 = vmatpush.msra.mxu0 %v289
      %377 = vmatpush.msra.mxu0 %v287
      %378 = vmatpush.msra.mxu0 %v285
      %379 = vmatpush.msra.mxu0 %v283
      %380 = vmatpush.msra.mxu0 %v281
      %381 = vmatpush.msra.mxu0 %v279
      %382 = vmatpush.msra.mxu0 %v277
      %383 = vmatpush.msra.mxu0 %v275
      %384 = vmatpush.msra.mxu0 %v273
      %385 = vmatpush.msra.mxu0 %v271
      %386 = vmatpush.msra.mxu0 %v269
      %387 = vmatmul.f32.gmra.mxu0 %v252
      %v388 = vpop.f32.mrf.mxu0
      %v389 = vadd.f32 %v303, %v388
      %390 = vmatmul.f32.gmra.mxu0 %v253
      %v391 = vpop.f32.mrf.mxu0
      %v392 = vadd.f32 %v303, %v391
      %393 = vmatmul.f32.gmra.mxu0 %v254
      %v394 = vpop.f32.mrf.mxu0
      %v395 = vadd.f32 %v303, %v394
      %396 = vmatmul.f32.gmra.mxu0 %v255
      %v397 = vpop.f32.mrf.mxu0
      %v398 = vadd.f32 %v303, %v397
      %399 = vmatmul.f32.gmra.mxu0 %v256
      %v400 = vpop.f32.mrf.mxu0
      %v401 = vadd.f32 %v303, %v400
      %402 = vmatmul.f32.gmra.mxu0 %v257
      %v403 = vpop.f32.mrf.mxu0
      %v404 = vadd.f32 %v303, %v403
      %405 = vmatmul.f32.gmra.mxu0 %v258
      %v406 = vpop.f32.mrf.mxu0
      %v407 = vadd.f32 %v303, %v406
      %408 = vmatmul.f32.gmra.mxu0 %v259
      %v409 = vpop.f32.mrf.mxu0
      %v410 = vadd.f32 %v303, %v409
      %411 = vmatmul.f32.gmra.mxu0 %v260
      %v412 = vpop.f32.mrf.mxu0
      %v413 = vadd.f32 %v303, %v412
      %414 = vmatmul.f32.gmra.mxu0 %v261
      %v415 = vpop.f32.mrf.mxu0
      %v416 = vadd.f32 %v303, %v415
      %417 = vmatmul.f32.gmra.mxu0 %v262
      %v418 = vpop.f32.mrf.mxu0
      %v419 = vadd.f32 %v303, %v418
      %420 = vmatmul.f32.gmra.mxu0 %v263
      %v421 = vpop.f32.mrf.mxu0
      %v422 = vadd.f32 %v303, %v421
      %423 = vmatmul.f32.gmra.mxu0 %v264
      %v424 = vpop.f32.mrf.mxu0
      %v425 = vadd.f32 %v303, %v424
      %426 = vmatmul.f32.gmra.mxu0 %v265
      %v427 = vpop.f32.mrf.mxu0
      %v428 = vadd.f32 %v303, %v427
      %429 = vmatmul.f32.gmra.mxu0 %v266
      %v430 = vpop.f32.mrf.mxu0
      %v431 = vadd.f32 %v303, %v430
      %432 = vmatmul.f32.gmra.mxu0 %v267
      %v433 = vpop.f32.mrf.mxu0
      %v434 = vadd.f32 %v303, %v433
      %435 = vdwg.mxu0
      %v436 = vmin.f32 %v389, 10.0
      %v437 = vmin.f32 %v392, 10.0
      %v438 = vmin.f32 %v395, 10.0
      %v439 = vmin.f32 %v398, 10.0
      %v440 = vmin.f32 %v401, 10.0
      %v441 = vmin.f32 %v404, 10.0
      %v442 = vmin.f32 %v407, 10.0
      %v443 = vmin.f32 %v410, 10.0
      %v444 = vmin.f32 %v413, 10.0
      %v445 = vmin.f32 %v416, 10.0
      %v446 = vmin.f32 %v419, 10.0
      %v447 = vmin.f32 %v422, 10.0
      %v448 = vmin.f32 %v425, 10.0
      %v449 = vmin.f32 %v428, 10.0
      %v450 = vmin.f32 %v431, 10.0
      %v451 = vmin.f32 %v434, 10.0
      %v452 = vld [vmem:[#allocation9] sm:$0xff]
      %v453 = vld [vmem:[#allocation9 + $0x8] sm:$0xff]
      %v454 = vld [vmem:[#allocation9 + $0x10] sm:$0xff]
      %v455 = vld [vmem:[#allocation9 + $0x18] sm:$0xff]
      %v456 = vld [vmem:[#allocation9 + $0x20] sm:$0xff]
      %v457 = vld [vmem:[#allocation9 + $0x28] sm:$0xff]
      %v458 = vld [vmem:[#allocation9 + $0x30] sm:$0xff]
      %v459 = vld [vmem:[#allocation9 + $0x38] sm:$0xff]
      %v460 = vld [vmem:[#allocation9 + $0x40] sm:$0xff]
      %v461 = vld [vmem:[#allocation9 + $0x48] sm:$0xff]
      %v462 = vld [vmem:[#allocation9 + $0x50] sm:$0xff]
      %v463 = vld [vmem:[#allocation9 + $0x58] sm:$0xff]
      %v464 = vld [vmem:[#allocation9 + $0x60] sm:$0xff]
      %v465 = vld [vmem:[#allocation9 + $0x68] sm:$0xff]
      %v466 = vld [vmem:[#allocation9 + $0x70] sm:$0xff]
      %v467 = vld [vmem:[#allocation9 + $0x78] sm:$0xff]
      %v468 = vmul.f32 %v436, 1.442695
      %v469 = vpow.pop %v468
      %v470 = vmul.f32 %v437, 1.442695
      %v471 = vpow.pop %v470
      %v472 = vmul.f32 %v438, 1.442695
      %v473 = vpow.pop %v472
      %v474 = vmul.f32 %v439, 1.442695
      %v475 = vpow.pop %v474
      %v476 = vmul.f32 %v440, 1.442695
      %v477 = vpow.pop %v476
      %v478 = vmul.f32 %v441, 1.442695
      %v479 = vpow.pop %v478
      %v480 = vmul.f32 %v442, 1.442695
      %v481 = vpow.pop %v480
      %v482 = vmul.f32 %v443, 1.442695
      %v483 = vpow.pop %v482
      %v484 = vmul.f32 %v444, 1.442695
      %v485 = vpow.pop %v484
      %v486 = vmul.f32 %v445, 1.442695
      %v487 = vpow.pop %v486
      %v488 = vmul.f32 %v446, 1.442695
      %v489 = vpow.pop %v488
      %v490 = vmul.f32 %v447, 1.442695
      %v491 = vpow.pop %v490
      %v492 = vmul.f32 %v448, 1.442695
      %v493 = vpow.pop %v492
      %v494 = vmul.f32 %v449, 1.442695
      %v495 = vpow.pop %v494
      %v496 = vmul.f32 %v450, 1.442695
      %v497 = vpow.pop %v496
      %v498 = vmul.f32 %v451, 1.442695
      %v499 = vpow.pop %v498
      %v500 = vmul.f32 %v452, %v469
      %v501 = vmul.f32 %v453, %v471
      %v502 = vmul.f32 %v454, %v473
      %v503 = vmul.f32 %v455, %v475
      %v504 = vmul.f32 %v456, %v477
      %v505 = vmul.f32 %v457, %v479
      %v506 = vmul.f32 %v458, %v481
      %v507 = vmul.f32 %v459, %v483
      %v508 = vmul.f32 %v460, %v485
      %v509 = vmul.f32 %v461, %v487
      %v510 = vmul.f32 %v462, %v489
      %v511 = vmul.f32 %v463, %v491
      %v512 = vmul.f32 %v464, %v493
      %v513 = vmul.f32 %v465, %v495
      %v514 = vmul.f32 %v466, %v497
      %v515 = vmul.f32 %v467, %v499
      %v516 = vadd.f32 %v324, %v500
      %v517 = vadd.f32 %v327, %v501
      %v518 = vadd.f32 %v330, %v502
      %v519 = vadd.f32 %v333, %v503
      %v520 = vadd.f32 %v336, %v504
      %v521 = vadd.f32 %v339, %v505
      %v522 = vadd.f32 %v342, %v506
      %v523 = vadd.f32 %v345, %v507
      %v524 = vadd.f32 %v348, %v508
      %v525 = vadd.f32 %v351, %v509
      %v526 = vadd.f32 %v354, %v510
      %v527 = vadd.f32 %v357, %v511
      %v528 = vadd.f32 %v360, %v512
      %v529 = vadd.f32 %v363, %v513
      %v530 = vadd.f32 %v366, %v514
      %v531 = vadd.f32 %v369, %v515
      %532 = vst [vmem:[#allocation11] sm:$0xff] %v516
      %533 = vst [vmem:[#allocation11 + $0x8] sm:$0xff] %v517
      %534 = vst [vmem:[#allocation11 + $0x10] sm:$0xff] %v518
      %535 = vst [vmem:[#allocation11 + $0x18] sm:$0xff] %v519
      %536 = vst [vmem:[#allocation11 + $0x20] sm:$0xff] %v520
      %537 = vst [vmem:[#allocation11 + $0x28] sm:$0xff] %v521
      %538 = vst [vmem:[#allocation11 + $0x30] sm:$0xff] %v522
      %539 = vst [vmem:[#allocation11 + $0x38] sm:$0xff] %v523
      %540 = vst [vmem:[#allocation11 + $0x40] sm:$0xff] %v524
      %541 = vst [vmem:[#allocation11 + $0x48] sm:$0xff] %v525
      %542 = vst [vmem:[#allocation11 + $0x50] sm:$0xff] %v526
      %543 = vst [vmem:[#allocation11 + $0x58] sm:$0xff] %v527
      %544 = vst [vmem:[#allocation11 + $0x60] sm:$0xff] %v528
      %545 = vst [vmem:[#allocation11 + $0x68] sm:$0xff] %v529
      %546 = vst [vmem:[#allocation11 + $0x70] sm:$0xff] %v530
      %547 = vst [vmem:[#allocation11 + $0x78] sm:$0xff] %v531
    $region45: #{tpu_custom_call.1} parent=1 // pred_fallthru
      _
    // Predicated region
    $region46: #{tpu_custom_call.1} parent=1 // pred_check
      _
    $region47: #{tpu_custom_call.1} parent=1 // pred_check_branch
      %549 = sbr.rel (0) target = $region49
    $region48: #{tpu_custom_call.1} parent=1 // pred_region
      %551 = vsyncadd [#allocation5], 0
      %s552 = sshll.u32 [#allocation11], 4
      %s553 = int_to_ptr.vmem [resolvable:$true] %s552
      %s554 = sshll.u32 %s5, 4
      %s555 = int_to_ptr.hbm [resolvable:$true] %s554
      %560 = dma.vmem_to_hbm [thread:$0]  %s553, 2048, %s555, [#allocation5], 128, 128, 8
    $region49: #{tpu_custom_call.1} parent=1 // pred_fallthru
      _
    // Predicated region
    $region50: #{tpu_custom_call.1} parent=1 // pred_check
      _
    $region51: #{tpu_custom_call.1} parent=1 // pred_check_branch
      %562 = sbr.rel (0) target = $region53
    $region52: #{tpu_custom_call.1} parent=1 // pred_region
      %564 = dma.done [#allocation5], 2048
    $region53: #{tpu_custom_call.1} parent=1 // pred_fallthru
      _
    %565 = vsyncpa [#allocation4], 1
    %566 = vsyncpa [#allocation7], 1
    %567 = vsyncpa [#allocation10], 1
    %568 = vsyncpa [#allocation5], 1

</llo_original>
